<compile_context>
chip_gen: v5e
topology: v5e:2x2
jax: 0.10.0
libtpu: 0.0.40
codegen_flags: <defaults>
</compile_context>

<pallas_src>
import functools
import numpy as np
import jax
import jax.numpy as jnp
from jax import lax
from jax.experimental import pallas as pl
from jax.experimental.pallas import tpu as pltpu

KS = 64        # ConvTranspose2d kernel size
STRIDE = 32
PAD = 16
EPS = 1e-5


def bilinear_init(in_channels, out_channels, kernel_size):
    factor = (kernel_size + 1) // 2
    if kernel_size % 2 == 1:
        center = factor - 1
    else:
        center = factor - 0.5
    og = np.ogrid[:kernel_size, :kernel_size]
    filt = (1 - abs(og[0] - center) / factor) * (1 - abs(og[1] - center) / factor)
    weight = np.zeros((in_channels, out_channels, kernel_size, kernel_size), dtype='float32')
    weight[range(in_channels), range(out_channels), :, :] = filt
    return jnp.asarray(weight)


# --------------------------- stage 1: Conv1x1 + ReLU + BN1 ---------------------------
def _stage1_kernel(x_ref, wc_ref, bc_ref, g1_ref, b1_ref, y_ref):
    x = x_ref[...]                                                       # [M, Cin]
    y = jnp.dot(x, wc_ref[...], preferred_element_type=jnp.float32) + bc_ref[...]
    y = jnp.maximum(y, 0.0)                                              # [M, K]
    m1 = jnp.mean(y, axis=0, keepdims=True)                              # [1, K]
    d = y - m1
    v1 = jnp.mean(d * d, axis=0, keepdims=True)                          # biased var >= 0
    y_ref[...] = d * lax.rsqrt(v1 + EPS) * g1_ref[...] + b1_ref[...]


# ------------------- stage 2: ConvTranspose2d as gather over row tiles ----------------
# Output row oh = 16*a + r  (a = 2*mm + 1 - p, r in [0,16)) receives contributions from
# input rows ih = j ("cur", kernel rows kh = 16*p + r) and ih = j-1 ("prev",
# kh = 32 + 16*p + r), where j = mm + 1 - p.  Analogously each output column gets
# contributions from at most two input columns, handled by the chunk assembly below.
def _deconv_kernel(ycur_ref, yprev_ref, w3_ref, bias_ref, out_ref, stats_ref,
                   *, hin, win, kp):
    p = pl.program_id(0)
    mm = pl.program_id(2)
    j = mm + 1 - p
    cur_ok = (j <= hin - 1).astype(jnp.float32)
    prev_ok = (j >= 1).astype(jnp.float32)

    ycur = ycur_ref[0, 0] * cur_ok                                       # [Win, K]
    yprev = yprev_ref[0, 0] * prev_ok                                    # [Win, K]
    lhs = jnp.concatenate([ycur, yprev], axis=1).astype(jnp.bfloat16)    # [Win, 2K]

    # one batched MXU matmul (bf16 operands, f32 accumulation)
    d = jnp.dot(lhs, w3_ref[0], preferred_element_type=jnp.float32)      # [Win, 2*16*32*Kp]
    # rows: (iw, dw, r)  -> slab (iw, dw) = d2[iw*32 + dw*16 : +16, :]
    d2 = d.reshape(win * 32, 32 * kp)

    half = 16 * kp                                                       # 128-aligned
    chunks = []
    for c in range(2 * win):                                             # 16-col chunks of output
        h0 = ((c + 1) % 2) * half
        piece = None
        b0 = (c + 1) // 2                                                # iw for dw = 0
        if b0 <= win - 1:
            piece = d2[b0 * 32:b0 * 32 + 16, h0:h0 + half]
        if c >= 1:
            b1 = (c - 1) // 2                                            # iw for dw = 1
            q = d2[b1 * 32 + 16:b1 * 32 + 32, h0:h0 + half]
            piece = q if piece is None else piece + q
        chunks.append(piece)
    tile = jnp.concatenate(chunks, axis=1)                               # [16, Wout*Kp]

    tile = jnp.maximum(tile + bias_ref[...], 0.0)                        # deconv bias + ReLU
    out_ref[...] = tile                                                  # single lane-dense store

    # per-tile partial sums for BN2 (padded channels are exactly zero -> no masking needed)
    s1 = jnp.sum(tile, axis=0, keepdims=True)                            # [1, Wout*Kp]
    s2 = jnp.sum(tile * tile, axis=0, keepdims=True)
    stats_ref[0] = jnp.concatenate([s1, s2], axis=0)                     # [2, Wout*Kp]


def fcn32_forward(x5, params):
    n, cin, hin, win = x5.shape
    k = params['wc'].shape[1]
    kp = ((k + 7) // 8) * 8                       # padded class dim (lane alignment)
    hout = (hin - 1) * STRIDE - 2 * PAD + KS      # == 32 * hin
    wout = (win - 1) * STRIDE - 2 * PAD + KS      # == 32 * win
    m = n * hin * win
    wo = wout * kp
    f32 = jnp.float32

    # ---------------- stage 1 (tiny; single all-VMEM program) ----------------
    x_flat = jnp.transpose(x5, (0, 2, 3, 1)).reshape(m, cin)
    vm = pl.BlockSpec(memory_space=pltpu.MemorySpace.VMEM)
    y = pl.pallas_call(
        _stage1_kernel,
        out_shape=jax.ShapeDtypeStruct((m, k), f32),
        in_specs=[vm] * 5,
        out_specs=vm,
    )(x_flat, params['wc'], params['bc'].reshape(1, k),
      params['g1'].reshape(1, k), params['b1'].reshape(1, k))
    y4 = y.reshape(n, hin, win, k)

    # ---------------- stage 2 weights / bias (layout plumbing only) ----------------
    # W3[p, dh*K+ic, ((dw*16 + r)*32 + w)*Kp + oc] = wd[ic, oc, 32*dh + 16*p + r, 32*dw + w]
    wd = params['wd']                                                    # [K, K, 64, 64]
    wdp = jnp.pad(wd, ((0, 0), (0, kp - k), (0, 0), (0, 0)))
    w3 = wdp.reshape(k, kp, 2, 2, 16, 2, 32)                             # ic,oc,dh,p,r,dw,w
    w3 = jnp.transpose(w3, (3, 2, 0, 5, 4, 6, 1))                        # p,dh,ic,dw,r,w,oc
    w3 = w3.reshape(2, 2 * k, 2 * 16 * 32 * kp).astype(jnp.bfloat16)
    bias_lane = jnp.tile(jnp.pad(params['bd'], (0, kp - k)), wout).reshape(1, wo)

    two_hin = 2 * hin
    nb = n * two_hin
    kernel = functools.partial(_deconv_kernel, hin=hin, win=win, kp=kp)
    out2d, stats = pl.pallas_call(
        kernel,
        grid=(2, n, hin),                         # (row parity, batch, row-block pair)
        out_shape=(jax.ShapeDtypeStruct((n * hout, wo), f32),
                   jax.ShapeDtypeStruct((nb, 2, wo), f32)),
        in_specs=[
            pl.BlockSpec((1, 1, win, k),
                         lambda pp, nn, mm: (nn, jnp.minimum(mm + 1 - pp, hin - 1), 0, 0)),
            pl.BlockSpec((1, 1, win, k),
                         lambda pp, nn, mm: (nn, jnp.maximum(mm - pp, 0), 0, 0)),
            pl.BlockSpec((1, 2 * k, 2 * 16 * 32 * kp),
                         lambda pp, nn, mm: (pp, 0, 0)),                  # resident per parity
            pl.BlockSpec((1, wo), lambda pp, nn, mm: (0, 0)),
        ],
        out_specs=(
            pl.BlockSpec((16, wo),
                         lambda pp, nn, mm: (nn * two_hin + 2 * mm + 1 - pp, 0)),
            pl.BlockSpec((1, 2, wo),
                         lambda pp, nn, mm: (nn * two_hin + 2 * mm + 1 - pp, 0, 0)),
        ),
        compiler_params=pltpu.CompilerParams(
            dimension_semantics=("parallel", "parallel", "parallel")),
    )(y4, y4, w3, bias_lane)

    # ---------------- stage 3: global BN2 (batch statistics) ----------------
    tot = stats.sum(axis=0).reshape(2, wout, kp).sum(axis=1)             # [2, Kp]
    cnt = float(n * hout * wout)
    mean2 = tot[0, :k] / cnt
    var2 = jnp.maximum(tot[1, :k] / cnt - mean2 * mean2, 0.0)            # clamp >= 0
    scale2 = params['g2'] * lax.rsqrt(var2 + EPS)
    shift2 = params['b2'] - mean2 * scale2
    # affine + crop of the padded class dim, fused by XLA with the NCHW transpose
    out = out2d.reshape(n, hout, wout, kp)[..., :k] * scale2 + shift2
    return jnp.transpose(out, (0, 3, 1, 2))                              # NCHW


def fcn32_reference(x5, p):
    """Pure-JAX reference mirroring the PyTorch forward (training-mode BN, f32)."""
    n, cin, hin, win = x5.shape
    k = p['wc'].shape[1]
    hout = (hin - 1) * STRIDE - 2 * PAD + KS
    wout = (win - 1) * STRIDE - 2 * PAD + KS
    hp = lax.Precision.HIGHEST
    y = jnp.einsum('nchw,ck->nkhw', x5, p['wc'], precision=hp) + p['bc'].reshape(1, k, 1, 1)
    y = jnp.maximum(y, 0.0)
    m = jnp.mean(y, axis=(0, 2, 3), keepdims=True)
    v = jnp.mean((y - m) ** 2, axis=(0, 2, 3), keepdims=True)
    y = (y - m) * lax.rsqrt(v + EPS) * p['g1'].reshape(1, k, 1, 1) + p['b1'].reshape(1, k, 1, 1)
    out = jnp.zeros((n, k, hout, wout), jnp.float32)
    for ih in range(hin):
        for iw in range(win):
            contrib = jnp.einsum('nc,cokl->nokl', y[:, :, ih, iw], p['wd'], precision=hp)
            oh0 = ih * STRIDE - PAD
            ow0 = iw * STRIDE - PAD
            kh0, kh1 = max(0, -oh0), min(KS, hout - oh0)
            kw0, kw1 = max(0, -ow0), min(KS, wout - ow0)
            out = out.at[:, :, oh0 + kh0:oh0 + kh1, ow0 + kw0:ow0 + kw1].add(
                contrib[:, :, kh0:kh1, kw0:kw1])
    out = jnp.maximum(out + p['bd'].reshape(1, k, 1, 1), 0.0)
    m2 = jnp.mean(out, axis=(0, 2, 3), keepdims=True)
    v2 = jnp.mean((out - m2) ** 2, axis=(0, 2, 3), keepdims=True)
    out = (out - m2) * lax.rsqrt(v2 + EPS) * p['g2'].reshape(1, k, 1, 1) + p['b2'].reshape(1, k, 1, 1)
    return out


if __name__ == "__main__":
    # small shapes consistent with the module: x5 is the backbone feature map
    N, CIN, K = 2, 32, 8          # FCN32(in_channel=32, num_classes=8)
    HIN = WIN = 2                 # -> output spatial 32*HIN = 64
    key = jax.random.PRNGKey(0)
    kx, kw, kb, kdb = jax.random.split(key, 4)

    x5 = jax.random.normal(kx, (N, CIN, HIN, WIN), jnp.float32)
    params = dict(
        wc=jax.random.normal(kw, (CIN, K), jnp.float32) * 0.1,   # Conv1x1 weight [Cin, K]
        bc=jax.random.normal(kb, (K,), jnp.float32) * 0.1,       # Conv1x1 bias
        g1=jnp.ones((K,), jnp.float32),                          # bn1 gamma
        b1=jnp.zeros((K,), jnp.float32),                         # bn1 beta
        wd=bilinear_init(K, K, KS),                              # DCN32 weight [Kin, Kout, 64, 64]
        bd=jax.random.normal(kdb, (K,), jnp.float32) * 0.1,      # DCN32 bias
        g2=jnp.ones((K,), jnp.float32),                          # dbn32 gamma
        b2=jnp.zeros((K,), jnp.float32),                         # dbn32 beta
    )

    out = jax.block_until_ready(jax.jit(fcn32_forward)(x5, params))
    ref = jax.block_until_ready(fcn32_reference(x5, params))

    assert out.shape == (N, K, STRIDE * HIN, STRIDE * WIN), out.shape
    # stage-2 matmul uses bf16 operands (f32 accumulation) per MXU best practice,
    # so compare against the f32 reference with a bf16-appropriate tolerance.
    if not jnp.allclose(out, ref, rtol=5e-2, atol=5e-2):
        raise AssertionError(
            f"mismatch vs reference, max abs err = {float(jnp.max(jnp.abs(out - ref)))}")
    print("KERNEL_OK")
</pallas_src>

<mosaic_0001>
module attributes {stable_mosaic.version = 11 : i64} {
  func.func @_stage1_kernel(%arg0: memref<8x32xf32, #tpu.memory_space<vmem>>, %arg1: memref<32x8xf32, #tpu.memory_space<vmem>>, %arg2: memref<1x8xf32, #tpu.memory_space<vmem>>, %arg3: memref<1x8xf32, #tpu.memory_space<vmem>>, %arg4: memref<1x8xf32, #tpu.memory_space<vmem>>, %arg5: memref<8x8xf32, #tpu.memory_space<vmem>>) attributes {dimension_semantics = [], scalar_prefetch = 0 : i64, scratch_operands = 0 : i64, tpu.core_type = #tpu.core_type<tc>} {
    %c0 = arith.constant 0 : index
    %c0_0 = arith.constant 0 : index
    %0 = vector.load %arg0[%c0, %c0_0] : memref<8x32xf32, #tpu.memory_space<vmem>>, vector<8x32xf32>
    %c0_1 = arith.constant 0 : index
    %c0_2 = arith.constant 0 : index
    %1 = vector.load %arg1[%c0_1, %c0_2] : memref<32x8xf32, #tpu.memory_space<vmem>>, vector<32x8xf32>
    %cst = arith.constant dense<0.000000e+00> : vector<8x8xf32>
    %2 = tpu.matmul %0, %1, %cst {dimension_numbers = #tpu.dot_dimension_numbers<[1], [0], [0], [1], [0, 0, 1, 1], [], []>} : vector<8x32xf32>, vector<32x8xf32>, vector<8x8xf32> -> vector<8x8xf32>
    %c0_3 = arith.constant 0 : index
    %c0_4 = arith.constant 0 : index
    %3 = vector.load %arg2[%c0_3, %c0_4] : memref<1x8xf32, #tpu.memory_space<vmem>>, vector<1x8xf32>
    %4 = vector.broadcast %3 : vector<1x8xf32> to vector<8x8xf32>
    %5 = arith.addf %2, %4 : vector<8x8xf32>
    %cst_5 = arith.constant 0.000000e+00 : f32
    %6 = vector.broadcast %cst_5 : f32 to vector<8x8xf32>
    %7 = arith.maximumf %5, %6 : vector<8x8xf32>
    %cst_6 = arith.constant dense<0.000000e+00> : vector<8xf32>
    %8 = vector.multi_reduction <add>, %7, %cst_6 [0] : vector<8x8xf32> to vector<8xf32>
    %9 = vector.shape_cast %8 : vector<8xf32> to vector<1x8xf32>
    %cst_7 = arith.constant 8.000000e+00 : f32
    %10 = vector.broadcast %cst_7 : f32 to vector<1x8xf32>
    %11 = arith.divf %9, %10 : vector<1x8xf32>
    %12 = vector.broadcast %11 : vector<1x8xf32> to vector<8x8xf32>
    %13 = arith.subf %7, %12 : vector<8x8xf32>
    %14 = arith.mulf %13, %13 : vector<8x8xf32>
    %cst_8 = arith.constant dense<0.000000e+00> : vector<8xf32>
    %15 = vector.multi_reduction <add>, %14, %cst_8 [0] : vector<8x8xf32> to vector<8xf32>
    %16 = vector.shape_cast %15 : vector<8xf32> to vector<1x8xf32>
    %cst_9 = arith.constant 8.000000e+00 : f32
    %17 = vector.broadcast %cst_9 : f32 to vector<1x8xf32>
    %18 = arith.divf %16, %17 : vector<1x8xf32>
    %cst_10 = arith.constant 9.99999974E-6 : f32
    %19 = vector.broadcast %cst_10 : f32 to vector<1x8xf32>
    %20 = arith.addf %18, %19 : vector<1x8xf32>
    %21 = math.rsqrt %20 : vector<1x8xf32>
    %22 = vector.broadcast %21 : vector<1x8xf32> to vector<8x8xf32>
    %23 = arith.mulf %13, %22 : vector<8x8xf32>
    %c0_11 = arith.constant 0 : index
    %c0_12 = arith.constant 0 : index
    %24 = vector.load %arg3[%c0_11, %c0_12] : memref<1x8xf32, #tpu.memory_space<vmem>>, vector<1x8xf32>
    %25 = vector.broadcast %24 : vector<1x8xf32> to vector<8x8xf32>
    %26 = arith.mulf %23, %25 : vector<8x8xf32>
    %c0_13 = arith.constant 0 : index
    %c0_14 = arith.constant 0 : index
    %27 = vector.load %arg4[%c0_13, %c0_14] : memref<1x8xf32, #tpu.memory_space<vmem>>, vector<1x8xf32>
    %28 = vector.broadcast %27 : vector<1x8xf32> to vector<8x8xf32>
    %29 = arith.addf %26, %28 : vector<8x8xf32>
    %c0_15 = arith.constant 0 : index
    %c0_16 = arith.constant 0 : index
    %30 = vector.load %arg5[%c0_15, %c0_16] : memref<8x8xf32, #tpu.memory_space<vmem>>, vector<8x8xf32>
    tpu.vector_store %arg5[%c0_15, %c0_16], %29 {strides = array<i32>} : memref<8x8xf32, #tpu.memory_space<vmem>>, vector<8x8xf32>,
    return
  }
}

module attributes {stable_mosaic.version = 11 : i64} {
  func.func @_deconv_kernel(%arg0: i32, %arg1: i32, %arg2: i32, %arg3: memref<1x1x2x8xf32, #tpu.memory_space<vmem>>, %arg4: memref<1x1x2x8xf32, #tpu.memory_space<vmem>>, %arg5: memref<1x16x8192xbf16, #tpu.memory_space<vmem>>, %arg6: memref<1x512xf32, #tpu.memory_space<vmem>>, %arg7: memref<16x512xf32, #tpu.memory_space<vmem>>, %arg8: memref<1x2x512xf32, #tpu.memory_space<vmem>>) attributes {dimension_semantics = [#tpu.dimension_semantics<parallel>, #tpu.dimension_semantics<parallel>, #tpu.dimension_semantics<parallel>], iteration_bounds = array<i64: 2, 2, 2>, scalar_prefetch = 0 : i64, scratch_operands = 0 : i64, tpu.core_type = #tpu.core_type<tc>, window_params = [{transform_indices = @transform_0, window_bounds = array<i64: 1, 1, 2, 8>}, {transform_indices = @transform_1, window_bounds = array<i64: 1, 1, 2, 8>}, {transform_indices = @transform_2, window_bounds = array<i64: 1, 16, 8192>}, {pipeline_mode = #tpu.pipeline_mode<synchronous>, transform_indices = @transform_3, window_bounds = array<i64: 1, 512>}, {transform_indices = @transform_4, window_bounds = array<i64: 16, 512>}, {transform_indices = @transform_5, window_bounds = array<i64: 1, 2, 512>}]} {
    %c1_i32 = arith.constant 1 : i32
    %0 = arith.addi %arg2, %c1_i32 : i32
    %1 = arith.subi %0, %arg0 : i32
    %c1_i32_0 = arith.constant 1 : i32
    %2 = arith.cmpi sle, %1, %c1_i32_0 : i32
    %3 = arith.extui %2 : i1 to i32
    %4 = arith.sitofp %3 : i32 to f32
    %c1_i32_1 = arith.constant 1 : i32
    %5 = arith.cmpi sge, %1, %c1_i32_1 : i32
    %6 = arith.extui %5 : i1 to i32
    %7 = arith.sitofp %6 : i32 to f32
    %c0 = arith.constant 0 : index
    %c0_2 = arith.constant 0 : index
    %c0_3 = arith.constant 0 : index
    %c0_4 = arith.constant 0 : index
    %8 = vector.load %arg3[%c0, %c0_2, %c0_3, %c0_4] : memref<1x1x2x8xf32, #tpu.memory_space<vmem>>, vector<1x1x2x8xf32>
    %9 = vector.shape_cast %8 : vector<1x1x2x8xf32> to vector<2x8xf32>
    %10 = vector.broadcast %4 : f32 to vector<2x8xf32>
    %11 = arith.mulf %9, %10 : vector<2x8xf32>
    %c0_5 = arith.constant 0 : index
    %c0_6 = arith.constant 0 : index
    %c0_7 = arith.constant 0 : index
    %c0_8 = arith.constant 0 : index
    %12 = vector.load %arg4[%c0_5, %c0_6, %c0_7, %c0_8] : memref<1x1x2x8xf32, #tpu.memory_space<vmem>>, vector<1x1x2x8xf32>
    %13 = vector.shape_cast %12 : vector<1x1x2x8xf32> to vector<2x8xf32>
    %14 = vector.broadcast %7 : f32 to vector<2x8xf32>
    %15 = arith.mulf %13, %14 : vector<2x8xf32>
    %16 = tpu.concatenate %11, %15 in 1 : vector<2x8xf32>, vector<2x8xf32> -> vector<2x16xf32>
    %17 = arith.truncf %16 : vector<2x16xf32> to vector<2x16xbf16>
    %c0_9 = arith.constant 0 : index
    %c0_10 = arith.constant 0 : index
    %c0_11 = arith.constant 0 : index
    %18 = vector.load %arg5[%c0_9, %c0_10, %c0_11] : memref<1x16x8192xbf16, #tpu.memory_space<vmem>>, vector<1x16x8192xbf16>
    %19 = vector.shape_cast %18 : vector<1x16x8192xbf16> to vector<16x8192xbf16>
    %cst = arith.constant dense<0.000000e+00> : vector<2x8192xf32>
    %20 = tpu.matmul %17, %19, %cst {dimension_numbers = #tpu.dot_dimension_numbers<[1], [0], [0], [1], [0, 0, 1, 1], [], []>} : vector<2x16xbf16>, vector<16x8192xbf16>, vector<2x8192xf32> -> vector<2x8192xf32>
    %21 = vector.shape_cast %20 : vector<2x8192xf32> to vector<64x256xf32>
    %22 = vector.extract_strided_slice %21 {offsets = [0, 128], sizes = [16, 128], strides = [1, 1]} : vector<64x256xf32> to vector<16x128xf32>
    %23 = vector.extract_strided_slice %21 {offsets = [32, 0], sizes = [16, 128], strides = [1, 1]} : vector<64x256xf32> to vector<16x128xf32>
    %24 = vector.extract_strided_slice %21 {offsets = [16, 0], sizes = [16, 128], strides = [1, 1]} : vector<64x256xf32> to vector<16x128xf32>
    %25 = arith.addf %23, %24 : vector<16x128xf32>
    %26 = vector.extract_strided_slice %21 {offsets = [32, 128], sizes = [16, 128], strides = [1, 1]} : vector<64x256xf32> to vector<16x128xf32>
    %27 = vector.extract_strided_slice %21 {offsets = [16, 128], sizes = [16, 128], strides = [1, 1]} : vector<64x256xf32> to vector<16x128xf32>
    %28 = arith.addf %26, %27 : vector<16x128xf32>
    %29 = vector.extract_strided_slice %21 {offsets = [48, 0], sizes = [16, 128], strides = [1, 1]} : vector<64x256xf32> to vector<16x128xf32>
    %30 = tpu.concatenate %22, %25, %28, %29 in 1 : vector<16x128xf32>, vector<16x128xf32>, vector<16x128xf32>, vector<16x128xf32> -> vector<16x512xf32>
    %c0_12 = arith.constant 0 : index
    %c0_13 = arith.constant 0 : index
    %31 = vector.load %arg6[%c0_12, %c0_13] : memref<1x512xf32, #tpu.memory_space<vmem>>, vector<1x512xf32>
    %32 = vector.broadcast %31 : vector<1x512xf32> to vector<16x512xf32>
    %33 = arith.addf %30, %32 : vector<16x512xf32>
    %cst_14 = arith.constant 0.000000e+00 : f32
    %34 = vector.broadcast %cst_14 : f32 to vector<16x512xf32>
    %35 = arith.maximumf %33, %34 : vector<16x512xf32>
    %c0_15 = arith.constant 0 : index
    %c0_16 = arith.constant 0 : index
    %36 = vector.load %arg7[%c0_15, %c0_16] : memref<16x512xf32, #tpu.memory_space<vmem>>, vector<16x512xf32>
    tpu.vector_store %arg7[%c0_15, %c0_16], %35 {strides = array<i32>} : memref<16x512xf32, #tpu.memory_space<vmem>>, vector<16x512xf32>,
    %cst_17 = arith.constant dense<0.000000e+00> : vector<512xf32>
    %37 = vector.multi_reduction <add>, %35, %cst_17 [0] : vector<16x512xf32> to vector<512xf32>
    %38 = vector.shape_cast %37 : vector<512xf32> to vector<1x512xf32>
    %39 = arith.mulf %35, %35 : vector<16x512xf32>
    %cst_18 = arith.constant dense<0.000000e+00> : vector<512xf32>
    %40 = vector.multi_reduction <add>, %39, %cst_18 [0] : vector<16x512xf32> to vector<512xf32>
    %41 = vector.shape_cast %40 : vector<512xf32> to vector<1x512xf32>
    %42 = tpu.concatenate %38, %41 in 0 : vector<1x512xf32>, vector<1x512xf32> -> vector<2x512xf32>
    %c0_19 = arith.constant 0 : index
    %c0_20 = arith.constant 0 : index
    %c0_21 = arith.constant 0 : index
    %43 = vector.load %arg8[%c0_19, %c0_20, %c0_21] : memref<1x2x512xf32, #tpu.memory_space<vmem>>, vector<1x2x512xf32>
    %44 = vector.shape_cast %43 : vector<1x2x512xf32> to vector<2x512xf32>
    %45 = vector.shape_cast %42 : vector<2x512xf32> to vector<1x2x512xf32>
    tpu.vector_store %arg8[%c0_19, %c0_20, %c0_21], %45 {strides = array<i32>} : memref<1x2x512xf32, #tpu.memory_space<vmem>>, vector<1x2x512xf32>,
    return
  }
  func.func @transform_0(%arg0: i32, %arg1: i32, %arg2: i32) -> (i32, i32, i32, i32) {
    %c1_i32 = arith.constant 1 : i32
    %0 = arith.addi %arg2, %c1_i32 : i32
    %1 = arith.subi %0, %arg0 : i32
    %c1_i32_0 = arith.constant 1 : i32
    %2 = arith.minsi %1, %c1_i32_0 : i32
    %c0_i32 = arith.constant 0 : i32
    %c0_i32_1 = arith.constant 0 : i32
    %c0_i32_2 = arith.constant 0 : i32
    return %arg1, %2, %c0_i32, %c0_i32_1 : i32, i32, i32, i32
  }
  func.func @transform_1(%arg0: i32, %arg1: i32, %arg2: i32) -> (i32, i32, i32, i32) {
    %0 = arith.subi %arg2, %arg0 : i32
    %c0_i32 = arith.constant 0 : i32
    %1 = arith.maxsi %0, %c0_i32 : i32
    %c0_i32_0 = arith.constant 0 : i32
    %c0_i32_1 = arith.constant 0 : i32
    %c0_i32_2 = arith.constant 0 : i32
    return %arg1, %1, %c0_i32_0, %c0_i32_1 : i32, i32, i32, i32
  }
  func.func @transform_2(%arg0: i32, %arg1: i32, %arg2: i32) -> (i32, i32, i32) {
    %c0_i32 = arith.constant 0 : i32
    %c0_i32_0 = arith.constant 0 : i32
    %c0_i32_1 = arith.constant 0 : i32
    return %arg0, %c0_i32, %c0_i32_0 : i32, i32, i32
  }
  func.func @transform_3(%arg0: i32, %arg1: i32, %arg2: i32) -> (i32, i32) {
    %c0_i32 = arith.constant 0 : i32
    %c0_i32_0 = arith.constant 0 : i32
    %c0_i32_1 = arith.constant 0 : i32
    return %c0_i32, %c0_i32_0 : i32, i32
  }
  func.func @transform_4(%arg0: i32, %arg1: i32, %arg2: i32) -> (i32, i32) {
    %c4_i32 = arith.constant 4 : i32
    %0 = arith.muli %arg1, %c4_i32 : i32
    %c2_i32 = arith.constant 2 : i32
    %1 = arith.muli %c2_i32, %arg2 : i32
    %2 = arith.addi %0, %1 : i32
    %c1_i32 = arith.constant 1 : i32
    %3 = arith.addi %2, %c1_i32 : i32
    %4 = arith.subi %3, %arg0 : i32
    %c0_i32 = arith.constant 0 : i32
    %c0_i32_0 = arith.constant 0 : i32
    return %4, %c0_i32 : i32, i32
  }
  func.func @transform_5(%arg0: i32, %arg1: i32, %arg2: i32) -> (i32, i32, i32) {
    %c4_i32 = arith.constant 4 : i32
    %0 = arith.muli %arg1, %c4_i32 : i32
    %c2_i32 = arith.constant 2 : i32
    %1 = arith.muli %c2_i32, %arg2 : i32
    %2 = arith.addi %0, %1 : i32
    %c1_i32 = arith.constant 1 : i32
    %3 = arith.addi %2, %c1_i32 : i32
    %4 = arith.subi %3, %arg0 : i32
    %c0_i32 = arith.constant 0 : i32
    %c0_i32_0 = arith.constant 0 : i32
    %c0_i32_1 = arith.constant 0 : i32
    return %4, %c0_i32, %c0_i32_0 : i32, i32, i32
  }
}

</mosaic_0001>

<llo_original>
// kernel: tile.8
$region0: #{tile.8}
  #allocation0 [shape = 's32[1]{0}', space=sflag, size = 0x4, scoped, tag = 'scoped memory for tile.8']
  %s0 = inlined_call_operand.vmem [shape: f32[8], index: 0, kind: input, shape index: {}]
  %s1 = inlined_call_operand.vmem [shape: f32[64,8], index: 1, kind: output, shape index: {}]
  // Predicated region
  $region2: #{tile.8} parent=0 // pred_check
    _
  $region3: #{tile.8} parent=0 // pred_check_branch
    %3 = sbr.rel (0) target = $region5
  $region4: #{tile.8} parent=0 // pred_region
    _
  $region5: #{tile.8} parent=0 // pred_fallthru
    _
  %v4 = vld [vmem:[%s0] ss:$0 sm:$0xff]
  %5 = vst [vmem:[%s1] sm:$0xff] %v4
  %s6 = scalar_lea.vmem %s1, 8
  %7 = vst [vmem:[%s6] sm:$0xff] %v4
  %s8 = scalar_lea.vmem %s1, 16
  %9 = vst [vmem:[%s8] sm:$0xff] %v4
  %s10 = scalar_lea.vmem %s1, 24
  %11 = vst [vmem:[%s10] sm:$0xff] %v4
  %s12 = scalar_lea.vmem %s1, 32
  %13 = vst [vmem:[%s12] sm:$0xff] %v4
  %s14 = scalar_lea.vmem %s1, 40
  %15 = vst [vmem:[%s14] sm:$0xff] %v4
  %s16 = scalar_lea.vmem %s1, 48
  %17 = vst [vmem:[%s16] sm:$0xff] %v4
  %s18 = scalar_lea.vmem %s1, 56
  %19 = vst [vmem:[%s18] sm:$0xff] %v4

// kernel: tile.9
$region0: #{tile.9}
  %s0 = inlined_call_operand.vmem [shape: f32[64,8], index: 0, kind: input, shape index: {}]
  %s1 = inlined_call_operand.vmem [shape: f32[1,512], index: 1, kind: output, shape index: {}]
  $region1: #{tile.9} parent=0
    #allocation0 [shape = 'u8[16384]{0}', space=vmem, size = 0x4000, scoped, tag = 'scoped mem for output reshape']
    %s2 = smov 3
    %v3 = vld [vmem:[%s0] ss:$16 sm:%s2]
    %s4 = smov 12
    %v5 = vld [vmem:[%s0] ss:$16 sm:%s4]
    %vm6 = vcmask 1043458
    %v7 = vsel %vm6, %v5, %v3
    %vm8 = vcmask 64512
    %9 = vst.msk [vmem:[#allocation0] ss:$8 sm:$0xf] %vm8, %v7
    %s10 = scalar_lea.vmem %s0, 15
    %s11 = smov 3
    %v12 = vld [vmem:[%s10] ss:$16 sm:%s11]
    %s13 = scalar_lea.vmem %s0, 15
    %s14 = smov 12
    %v15 = vld [vmem:[%s13] ss:$16 sm:%s14]
    %vm16 = vcmask 1043458
    %v17 = vsel %vm16, %v15, %v12
    %18 = vrot.lane.b32.xlu0 %v17, 120
    %v19 = vpop.permute.xlu0 %18
    %vm20 = vcmask 1048512
    %21 = vst.msk [vmem:[#allocation0] ss:$8 sm:$0xf] %vm20, %v19
    %s22 = scalar_lea.vmem %s0, 14
    %s23 = smov 3
    %v24 = vld [vmem:[%s22] ss:$16 sm:%s23]
    %s25 = scalar_lea.vmem %s0, 14
    %s26 = smov 12
    %v27 = vld [vmem:[%s25] ss:$16 sm:%s26]
    %vm28 = vcmask 1043458
    %v29 = vsel %vm28, %v27, %v24
    %30 = vrot.lane.b32.xlu0 %v29, 112
    %v31 = vpop.permute.xlu0 %30
    %vm32 = vcmask 982912
    %33 = vst.msk [vmem:[#allocation0] ss:$8 sm:$0xf] %vm32, %v31
    %s34 = scalar_lea.vmem %s0, 13
    %s35 = smov 3
    %v36 = vld [vmem:[%s34] ss:$16 sm:%s35]
    %s37 = scalar_lea.vmem %s0, 13
    %s38 = smov 12
    %v39 = vld [vmem:[%s37] ss:$16 sm:%s38]
    %vm40 = vcmask 1043458
    %v41 = vsel %vm40, %v39, %v36
    %42 = vrot.lane.b32.xlu0 %v41, 104
    %v43 = vpop.permute.xlu0 %42
    %vm44 = vcmask 917312
    %45 = vst.msk [vmem:[#allocation0] ss:$8 sm:$0xf] %vm44, %v43
    %s46 = scalar_lea.vmem %s0, 12
    %s47 = smov 3
    %v48 = vld [vmem:[%s46] ss:$16 sm:%s47]
    %s49 = scalar_lea.vmem %s0, 12
    %s50 = smov 12
    %v51 = vld [vmem:[%s49] ss:$16 sm:%s50]
    %vm52 = vcmask 1043458
    %v53 = vsel %vm52, %v51, %v48
    %54 = vrot.lane.b32.xlu0 %v53, 96
    %v55 = vpop.permute.xlu0 %54
    %vm56 = vcmask 851712
    %57 = vst.msk [vmem:[#allocation0] ss:$8 sm:$0xf] %vm56, %v55
    %s58 = scalar_lea.vmem %s0, 11
    %s59 = smov 3
    %v60 = vld [vmem:[%s58] ss:$16 sm:%s59]
    %s61 = scalar_lea.vmem %s0, 11
    %s62 = smov 12
    %v63 = vld [vmem:[%s61] ss:$16 sm:%s62]
    %vm64 = vcmask 1043458
    %v65 = vsel %vm64, %v63, %v60
    %66 = vrot.lane.b32.xlu0 %v65, 88
    %v67 = vpop.permute.xlu0 %66
    %vm68 = vcmask 786112
    %69 = vst.msk [vmem:[#allocation0] ss:$8 sm:$0xf] %vm68, %v67
    %s70 = scalar_lea.vmem %s0, 10
    %s71 = smov 3
    %v72 = vld [vmem:[%s70] ss:$16 sm:%s71]
    %s73 = scalar_lea.vmem %s0, 10
    %s74 = smov 12
    %v75 = vld [vmem:[%s73] ss:$16 sm:%s74]
    %vm76 = vcmask 1043458
    %v77 = vsel %vm76, %v75, %v72
    %78 = vrot.lane.b32.xlu0 %v77, 80
    %v79 = vpop.permute.xlu0 %78
    %vm80 = vcmask 720512
    %81 = vst.msk [vmem:[#allocation0] ss:$8 sm:$0xf] %vm80, %v79
    %s82 = scalar_lea.vmem %s0, 9
    %s83 = smov 3
    %v84 = vld [vmem:[%s82] ss:$16 sm:%s83]
    %s85 = scalar_lea.vmem %s0, 9
    %s86 = smov 12
    %v87 = vld [vmem:[%s85] ss:$16 sm:%s86]
    %vm88 = vcmask 1043458
    %v89 = vsel %vm88, %v87, %v84
    %90 = vrot.lane.b32.xlu0 %v89, 72
    %v91 = vpop.permute.xlu0 %90
    %vm92 = vcmask 654912
    %93 = vst.msk [vmem:[#allocation0] ss:$8 sm:$0xf] %vm92, %v91
    %s94 = scalar_lea.vmem %s0, 8
    %s95 = smov 3
    %v96 = vld [vmem:[%s94] ss:$16 sm:%s95]
    %s97 = scalar_lea.vmem %s0, 8
    %s98 = smov 12
    %v99 = vld [vmem:[%s97] ss:$16 sm:%s98]
    %vm100 = vcmask 1043458
    %v101 = vsel %vm100, %v99, %v96
    %102 = vrot.lane.b32.xlu0 %v101, 64
    %v103 = vpop.permute.xlu0 %102
    %vm104 = vcmask 589312
    %105 = vst.msk [vmem:[#allocation0] ss:$8 sm:$0xf] %vm104, %v103
    %s106 = scalar_lea.vmem %s0, 7
    %s107 = smov 3
    %v108 = vld [vmem:[%s106] ss:$16 sm:%s107]
    %s109 = scalar_lea.vmem %s0, 7
    %s110 = smov 12
    %v111 = vld [vmem:[%s109] ss:$16 sm:%s110]
    %vm112 = vcmask 1043458
    %v113 = vsel %vm112, %v111, %v108
    %114 = vrot.lane.b32.xlu0 %v113, 56
    %v115 = vpop.permute.xlu0 %114
    %vm116 = vcmask 523712
    %117 = vst.msk [vmem:[#allocation0] ss:$8 sm:$0xf] %vm116, %v115
    %s118 = scalar_lea.vmem %s0, 6
    %s119 = smov 3
    %v120 = vld [vmem:[%s118] ss:$16 sm:%s119]
    %s121 = scalar_lea.vmem %s0, 6
    %s122 = smov 12
    %v123 = vld [vmem:[%s121] ss:$16 sm:%s122]
    %vm124 = vcmask 1043458
    %v125 = vsel %vm124, %v123, %v120
    %126 = vrot.lane.b32.xlu0 %v125, 48
    %v127 = vpop.permute.xlu0 %126
    %vm128 = vcmask 458112
    %129 = vst.msk [vmem:[#allocation0] ss:$8 sm:$0xf] %vm128, %v127
    %s130 = scalar_lea.vmem %s0, 5
    %s131 = smov 3
    %v132 = vld [vmem:[%s130] ss:$16 sm:%s131]
    %s133 = scalar_lea.vmem %s0, 5
    %s134 = smov 12
    %v135 = vld [vmem:[%s133] ss:$16 sm:%s134]
    %vm136 = vcmask 1043458
    %v137 = vsel %vm136, %v135, %v132
    %138 = vrot.lane.b32.xlu0 %v137, 40
    %v139 = vpop.permute.xlu0 %138
    %vm140 = vcmask 392512
    %141 = vst.msk [vmem:[#allocation0] ss:$8 sm:$0xf] %vm140, %v139
    %s142 = scalar_lea.vmem %s0, 4
    %s143 = smov 3
    %v144 = vld [vmem:[%s142] ss:$16 sm:%s143]
    %s145 = scalar_lea.vmem %s0, 4
    %s146 = smov 12
    %v147 = vld [vmem:[%s145] ss:$16 sm:%s146]
    %vm148 = vcmask 1043458
    %v149 = vsel %vm148, %v147, %v144
    %150 = vrot.lane.b32.xlu0 %v149, 32
    %v151 = vpop.permute.xlu0 %150
    %vm152 = vcmask 326912
    %153 = vst.msk [vmem:[#allocation0] ss:$8 sm:$0xf] %vm152, %v151
    %s154 = scalar_lea.vmem %s0, 3
    %s155 = smov 3
    %v156 = vld [vmem:[%s154] ss:$16 sm:%s155]
    %s157 = scalar_lea.vmem %s0, 3
    %s158 = smov 12
    %v159 = vld [vmem:[%s157] ss:$16 sm:%s158]
    %vm160 = vcmask 1043458
    %v161 = vsel %vm160, %v159, %v156
    %162 = vrot.lane.b32.xlu0 %v161, 24
    %v163 = vpop.permute.xlu0 %162
    %vm164 = vcmask 261312
    %165 = vst.msk [vmem:[#allocation0] ss:$8 sm:$0xf] %vm164, %v163
    %s166 = scalar_lea.vmem %s0, 2
    %s167 = smov 3
    %v168 = vld [vmem:[%s166] ss:$16 sm:%s167]
    %s169 = scalar_lea.vmem %s0, 2
    %s170 = smov 12
    %v171 = vld [vmem:[%s169] ss:$16 sm:%s170]
    %vm172 = vcmask 1043458
    %v173 = vsel %vm172, %v171, %v168
    %174 = vrot.lane.b32.xlu0 %v173, 16
    %v175 = vpop.permute.xlu0 %174
    %vm176 = vcmask 195712
    %177 = vst.msk [vmem:[#allocation0] ss:$8 sm:$0xf] %vm176, %v175
    %s178 = scalar_lea.vmem %s0, 1
    %s179 = smov 3
    %v180 = vld [vmem:[%s178] ss:$16 sm:%s179]
    %s181 = scalar_lea.vmem %s0, 1
    %s182 = smov 12
    %v183 = vld [vmem:[%s181] ss:$16 sm:%s182]
    %vm184 = vcmask 1043458
    %v185 = vsel %vm184, %v183, %v180
    %186 = vrot.lane.b32.xlu0 %v185, 8
    %v187 = vpop.permute.xlu0 %186
    %vm188 = vcmask 130112
    %189 = vst.msk [vmem:[#allocation0] ss:$8 sm:$0xf] %vm188, %v187
    %s191 = ssub.s32 2, 1
    %v192 = vld [vmem:[#allocation0] sm:%s191]
    %s194 = ssub.s32 2, 1
    %195 = vst [vmem:[%s1] sm:%s194] %v192
    %s196 = scalar_lea.vmem [#allocation0], 8
    %v197 = vld [vmem:[%s196] sm:%s191]
    %s199 = ssub.s32 2, 1
    %s200 = scalar_lea.vmem %s1, 1
    %201 = vst [vmem:[%s200] sm:%s199] %v197
    %s202 = scalar_lea.vmem [#allocation0], 16
    %v203 = vld [vmem:[%s202] sm:%s191]
    %s205 = ssub.s32 2, 1
    %s206 = scalar_lea.vmem %s1, 2
    %207 = vst [vmem:[%s206] sm:%s205] %v203
    %s208 = scalar_lea.vmem [#allocation0], 24
    %v209 = vld [vmem:[%s208] sm:%s191]
    %s211 = ssub.s32 2, 1
    %s212 = scalar_lea.vmem %s1, 3
    %213 = vst [vmem:[%s212] sm:%s211] %v209

// kernel: fcn32_forward.2
$region0: #{fcn32_forward.2}
  #allocation0 [shape = 'u32[]', space=smem, size = 0x4, offset = 0x4, fixed_abs, tag = 'smem constant byte address 0x4 - core index']
  #allocation1 [shape = 'u32[72,128]{1,0:T(1,128)}', space=vmem, size = 0x9000, scoped, tag = 'internal scratch']
  %s0 = inlined_call_operand.vmem [shape: f32[8,32], index: 0, kind: input, shape index: {}]
  %s1 = inlined_call_operand.vmem [shape: f32[32,8], index: 1, kind: input, shape index: {}]
  %s2 = inlined_call_operand.vmem [shape: f32[1,8], index: 2, kind: input, shape index: {}]
  %s3 = inlined_call_operand.vmem [shape: f32[1,8], index: 3, kind: input, shape index: {}]
  %s4 = inlined_call_operand.vmem [shape: f32[1,8], index: 4, kind: input, shape index: {}]
  %s5 = inlined_call_operand.vmem [shape: f32[8,8], index: 5, kind: output, shape index: {}]
  %s6 = sld [smem:[#allocation0]]
  $region30: #{fcn32_forward.2} parent=0
    _
  %s8 = ssub.s32 1, %s6
  %s9 = scalar_select 0, %s8, %s6
  // Predicated region
  $region2: #{fcn32_forward.2} parent=0 // pred_check
    _
  $region3: #{fcn32_forward.2} parent=0 // pred_check_branch
    %11 = sbr.rel (0) target = $region5
  $region4: #{fcn32_forward.2} parent=0 // pred_region
    _
  $region5: #{fcn32_forward.2} parent=0 // pred_fallthru
    _
  // Predicated region
  $region6: #{fcn32_forward.2} parent=0 // pred_check
    _
  $region7: #{fcn32_forward.2} parent=0 // pred_check_branch
    %13 = sbr.rel (0) target = $region9
  $region8: #{fcn32_forward.2} parent=0 // pred_region
    _
  $region9: #{fcn32_forward.2} parent=0 // pred_fallthru
    _
  // Predicated region
  $region10: #{fcn32_forward.2} parent=0 // pred_check
    _
  $region11: #{fcn32_forward.2} parent=0 // pred_check_branch
    %15 = sbr.rel (0) target = $region13
  $region12: #{fcn32_forward.2} parent=0 // pred_region
    _
  $region13: #{fcn32_forward.2} parent=0 // pred_fallthru
    _
  // Predicated region
  $region14: #{fcn32_forward.2} parent=0 // pred_check
    _
  $region15: #{fcn32_forward.2} parent=0 // pred_check_branch
    %17 = sbr.rel (0) target = $region17
  $region16: #{fcn32_forward.2} parent=0 // pred_region
    _
  $region17: #{fcn32_forward.2} parent=0 // pred_fallthru
    _
  // Predicated region
  $region18: #{fcn32_forward.2} parent=0 // pred_check
    _
  $region19: #{fcn32_forward.2} parent=0 // pred_check_branch
    %19 = sbr.rel (0) target = $region21
  $region20: #{fcn32_forward.2} parent=0 // pred_region
    _
  $region21: #{fcn32_forward.2} parent=0 // pred_fallthru
    _
  %v20 = vld [vmem:[%s0] sm:$0xff]
  %v21 = vld [vmem:[%s1] sm:$0xff]
  %v22 = vld [vmem:[%s1 + $0x8] sm:$0xff]
  %v23 = vld [vmem:[%s1 + $0x10] sm:$0xff]
  %v24 = vld [vmem:[%s1 + $0x18] sm:$0xff]
  %v25 = vld [vmem:[%s2] sm:$0x1]
  %v27 = vperm.slane %v25, 0
  %vm29 = vcmask 261120
  %v31 = vsel %vm29, %v20, 0
  %33 = vmatpush.msra.mxu0 0.0
  %34 = vmatpush.msra.mxu0 0.0
  %35 = vmatpush.msra.mxu0 0.0
  %36 = vmatpush.msra.mxu0 0.0
  %37 = vmatpush.msra.mxu0 0.0
  %38 = vmatpush.msra.mxu0 0.0
  %39 = vmatpush.msra.mxu0 0.0
  %40 = vmatpush.msra.mxu0 0.0
  %41 = vmatpush.msra.mxu0 0.0
  %42 = vmatpush.msra.mxu0 0.0
  %43 = vmatpush.msra.mxu0 0.0
  %44 = vmatpush.msra.mxu0 0.0
  %45 = vmatpush.msra.mxu0 %v24
  %46 = vmatpush.msra.mxu0 %v23
  %47 = vmatpush.msra.mxu0 %v22
  %48 = vmatpush.msra.mxu0 %v21
  %49 = vmatmul.f32.gmra.mxu0 %v31
  %v50 = vpop.f32.mrf.mxu0
  %v51 = vadd.f32 %v27, %v50
  %52 = vdwg.mxu0
  %v53 = vmax.f32 %v51, 0.0
  %vm54 = vcmask 64512
  %v55 = vsel %vm54, %v53, 0.0
  %v56 = vrot.slane %v55, 4
  %v57 = vadd.f32 %v55, %v56
  %v58 = vrot.slane %v57, 2
  %v59 = vadd.f32 %v57, %v58
  %v60 = vrot.slane %v59, 1
  %v61 = vadd.f32 %v59, %v60
  %v62 = vrcp.pop 8.0
  %v63 = vmul.f32 8.0, %v62
  %v64 = vsub.f32 1.0, %v63
  %v65 = vmul.f32 %v62, %v64
  %v66 = vadd.f32 %v62, %v65
  %vm67 = vweird.f32 %v62
  %v68 = vsel %vm67, %v62, %v66
  %v69 = vmul.f32 %v61, %v68
  %v70 = vsub.f32 %v53, %v69
  %v71 = vmul.f32 %v70, %v70
  %v72 = vsel %vm54, %v71, 0.0
  %v73 = vrot.slane %v72, 4
  %v74 = vadd.f32 %v72, %v73
  %v75 = vrot.slane %v74, 2
  %v76 = vadd.f32 %v74, %v75
  %v77 = vrot.slane %v76, 1
  %v78 = vadd.f32 %v76, %v77
  %v79 = vmul.f32 %v78, %v68
  %v80 = vadd.f32 %v79, 1e-05
  %v81 = vrsqrt.pop %v80
  %v82 = vmul.f32 %v81, %v80
  %v83 = vmul.f32 %v82, %v81
  %v84 = vmul.f32 0.5, %v83
  %v85 = vsub.f32 1.5, %v84
  %v86 = vmul.f32 %v81, %v85
  %vm87 = vweird.f32 %v80
  %vm88 = vweird.f32 %v81
  %vm89 = vmor %vm87, %vm88
  %v90 = vsel %vm89, %v81, %v86
  %v91 = vmul.f32 %v70, %v90
  %v92 = vld [vmem:[%s3] sm:$0x1]
  %v94 = vperm.slane %v92, 0
  %v96 = vmul.f32 %v91, %v94
  %v97 = vld [vmem:[%s4] sm:$0x1]
  %v99 = vperm.slane %v97, 0
  %v101 = vadd.f32 %v96, %v99
  %102 = vst.msk [vmem:[%s5] sm:$0xff] %vm54, %v101
  // Predicated region
  $region22: #{fcn32_forward.2} parent=0 // pred_check
    _
  $region23: #{fcn32_forward.2} parent=0 // pred_check_branch
    %104 = sbr.rel (0) target = $region25
  $region24: #{fcn32_forward.2} parent=0 // pred_region
    _
  $region25: #{fcn32_forward.2} parent=0 // pred_fallthru
    _
  // Predicated region
  $region26: #{fcn32_forward.2} parent=0 // pred_check
    _
  $region27: #{fcn32_forward.2} parent=0 // pred_check_branch
    %106 = sbr.rel (0) target = $region29
  $region28: #{fcn32_forward.2} parent=0 // pred_region
    _
  $region29: #{fcn32_forward.2} parent=0 // pred_fallthru
    _

// kernel: fcn32_forward.3
$region0: #{fcn32_forward.3}
  #allocation0 [shape = 'u32[]', space=smem, size = 0x4, offset = 0x4, fixed_abs, tag = 'smem constant byte address 0x4 - core index']
  #allocation1 [shape = 'u32[72,128]{1,0:T(1,128)}', space=vmem, size = 0x9000, scoped, tag = 'internal scratch']
  %s0 = inlined_call_operand.vmem [shape: f32[2,2,2,8], index: 0, kind: input, shape index: {}, may-alias: {0,1}]
  %s1 = inlined_call_operand.vmem [shape: f32[2,2,2,8], index: 1, kind: input, shape index: {}, may-alias: {0,1}]
  %s2 = inlined_call_operand.vmem [shape: bf16[2,16,8192], index: 2, kind: input, shape index: {}]
  %s3 = inlined_call_operand.vmem [shape: f32[1,512], index: 3, kind: input, shape index: {}]
  %s4 = inlined_call_operand.vmem [shape: f32[128,512], index: 4, kind: output, shape index: {0}]
  %s5 = inlined_call_operand.vmem [shape: f32[8,2,512], index: 5, kind: output, shape index: {1}]
  %6 = xla_tuple %s4, %s5
  %s7 = sld [smem:[#allocation0]]
  $region57: #{fcn32_forward.3} parent=0
    _
  %s9 = ssub.s32 1, %s7
  %s10 = scalar_select 0, %s9, %s7
  loop: start=0, step=1, limit=10
  $region2: #{fcn32_forward.3} parent=0 // loop_pre_header
    _
  $region3: #{fcn32_forward.3} parent=0 // loop_header
    %s12 = sphi 0, %s16
    %p13 = scmp.ge.s32.totalorder %s12, 10
    %s19 = sphi 0, %s38
    %s20 = sphi 0, %s34
    %s21 = sphi 0, %s30
    %s22 = sphi 0, %s19
    %s23 = sphi 0, %s20
    %s24 = sphi 0, %s21
    %s25 = sphi 0, %s22
    %s26 = sphi 0, %s23
    %s27 = sphi 0, %s24
    %s51 = sphi 0, %s53
    %s54 = sphi 0, %s51
    %s55 = sphi 0, %s54
    %s71 = sphi 0, %s55
    %s85 = sphi 0, %s87
    %s88 = sphi 0, %s85
    %s89 = sphi 0, %s88
    %s105 = sphi 0, %s89
    %s111 = sphi 0, %s113
    %s114 = sphi 0, %s111
    %s115 = sphi 0, %s114
    %s131 = sphi 0, %s115
    %s135 = sphi 0, %s135
    %s137 = sphi 0, %s135
    %s138 = sphi 0, %s137
    %s152 = sphi 0, %s138
    %s168 = sphi 0, %s170
    %s171 = sphi 0, %s168
    %s172 = sphi 0, %s171
    %s188 = sphi 0, %s172
    %s204 = sphi 0, %s206
    %s207 = sphi 0, %s204
    %s208 = sphi 0, %s207
    %s224 = sphi 0, %s208
  $region4: #{fcn32_forward.3} parent=0 // loop_header_branch
    %15 = sbr.rel (%p13) target = $region8
  $region5: #{fcn32_forward.3} parent=0 // loop_body
    %s17 = ssub.s32 %s12, 1
    %s18 = ssub.s32 %s12, 2
    %s28 = sadd.s32 1, %s21
    %p29 = scmp.ge.s32.totalorder %s28, 2
    %s30 = scalar_select %p29, 0, %s28
    %s31 = sadd.s32 1, %s20
    %s32 = scalar_select %p29, %s31, %s20
    %p33 = scmp.ge.s32.totalorder %s32, 2
    %s34 = scalar_select %p33, 0, %s32
    %s35 = sadd.s32 1, %s19
    %s36 = scalar_select %p33, %s35, %s19
    %p37 = scmp.ge.s32.totalorder %s36, 2
    %s38 = scalar_select %p37, 0, %s36
    %s39 = sadd.s32 %s21, 1
    %s40 = ssub.s32 %s39, %s19
    %p41 = scmp.lt.s32.totalorder %s40, 1
    %s42 = scalar_select %p41, %s40, 1
    %s43 = sadd.s32 %s30, 1
    %s44 = ssub.s32 %s43, %s38
    %p45 = scmp.lt.s32.totalorder %s44, 1
    %s46 = scalar_select %p45, %s44, 1
    %s47 = ssub.s32 %s20, %s34
    %s48 = ssub.s32 %s42, %s46
    %s49 = sor.u32 %s47, %s48
    %p50 = scmp.eq.s32.totalorder %s49, 0
    %s52 = sadd.s32 %s51, 1
    %s53 = scalar_select %p50, %s51, %s52
    %p56 = pneg %p50
    %p57 = scmp.eq.s32.totalorder %s12, 7
    %p58 = por %p56, %p57
    %p59 = scmp.ne.s32.totalorder %s51, %s54
    %p60 = scmp.eq.s32.totalorder %s12, 0
    %p61 = por %p59, %p60
    %p62 = scmp.ne.s32.totalorder %s51, %s54
    %p63 = scmp.eq.s32.totalorder %s17, 7
    %p64 = por %p62, %p63
    %p65 = scmp.ne.s32.totalorder %s54, %s55
    %p66 = scmp.eq.s32.totalorder %s17, 0
    %p67 = por %p65, %p66
    %p68 = scmp.ne.s32.totalorder %s54, %s55
    %p69 = scmp.eq.s32.totalorder %s18, 7
    %p70 = por %p68, %p69
    %p72 = scmp.ne.s32.totalorder %s55, %s71
    %p73 = scmp.eq.s32.totalorder %s18, 0
    %p74 = por %p72, %p73
    %s75 = ssub.s32 %s21, %s19
    %p76 = scmp.gt.s32.totalorder %s75, 0
    %s77 = scalar_select %p76, %s75, 0
    %s78 = ssub.s32 %s30, %s38
    %p79 = scmp.gt.s32.totalorder %s78, 0
    %s80 = scalar_select %p79, %s78, 0
    %s81 = ssub.s32 %s20, %s34
    %s82 = ssub.s32 %s77, %s80
    %s83 = sor.u32 %s81, %s82
    %p84 = scmp.eq.s32.totalorder %s83, 0
    %s86 = sadd.s32 %s85, 1
    %s87 = scalar_select %p84, %s85, %s86
    %p90 = pneg %p84
    %p91 = scmp.eq.s32.totalorder %s12, 7
    %p92 = por %p90, %p91
    %p93 = scmp.ne.s32.totalorder %s85, %s88
    %p94 = scmp.eq.s32.totalorder %s12, 0
    %p95 = por %p93, %p94
    %p96 = scmp.ne.s32.totalorder %s85, %s88
    %p97 = scmp.eq.s32.totalorder %s17, 7
    %p98 = por %p96, %p97
    %p99 = scmp.ne.s32.totalorder %s88, %s89
    %p100 = scmp.eq.s32.totalorder %s17, 0
    %p101 = por %p99, %p100
    %p102 = scmp.ne.s32.totalorder %s88, %s89
    %p103 = scmp.eq.s32.totalorder %s18, 7
    %p104 = por %p102, %p103
    %p106 = scmp.ne.s32.totalorder %s89, %s105
    %p107 = scmp.eq.s32.totalorder %s18, 0
    %p108 = por %p106, %p107
    %s109 = ssub.s32 %s19, %s38
    %p110 = scmp.eq.s32.totalorder %s109, 0
    %s112 = sadd.s32 %s111, 1
    %s113 = scalar_select %p110, %s111, %s112
    %p116 = pneg %p110
    %p117 = scmp.eq.s32.totalorder %s12, 7
    %p118 = por %p116, %p117
    %p119 = scmp.ne.s32.totalorder %s111, %s114
    %p120 = scmp.eq.s32.totalorder %s12, 0
    %p121 = por %p119, %p120
    %p122 = scmp.ne.s32.totalorder %s111, %s114
    %p123 = scmp.eq.s32.totalorder %s17, 7
    %p124 = por %p122, %p123
    %p125 = scmp.ne.s32.totalorder %s114, %s115
    %p126 = scmp.eq.s32.totalorder %s17, 0
    %p127 = por %p125, %p126
    %p128 = scmp.ne.s32.totalorder %s114, %s115
    %p129 = scmp.eq.s32.totalorder %s18, 7
    %p130 = por %p128, %p129
    %p132 = scmp.ne.s32.totalorder %s115, %s131
    %p133 = scmp.eq.s32.totalorder %s18, 0
    %p134 = por %p132, %p133
    %s136 = sadd.s32 %s135, 1
    %p139 = scmp.eq.s32.totalorder %s12, 7
    %p140 = scmp.ne.s32.totalorder %s135, %s137
    %p141 = scmp.eq.s32.totalorder %s12, 0
    %p142 = por %p140, %p141
    %p143 = scmp.ne.s32.totalorder %s135, %s137
    %p144 = scmp.eq.s32.totalorder %s17, 7
    %p145 = por %p143, %p144
    %p146 = scmp.ne.s32.totalorder %s137, %s138
    %p147 = scmp.eq.s32.totalorder %s17, 0
    %p148 = por %p146, %p147
    %p149 = scmp.ne.s32.totalorder %s137, %s138
    %p150 = scmp.eq.s32.totalorder %s18, 7
    %p151 = por %p149, %p150
    %p153 = scmp.ne.s32.totalorder %s138, %s152
    %p154 = scmp.eq.s32.totalorder %s18, 0
    %p155 = por %p153, %p154
    %s156 = smul.u32 %s20, 4
    %s157 = smul.u32 %s21, 2
    %s158 = sadd.s32 %s156, %s157
    %s159 = sadd.s32 %s158, 1
    %s160 = ssub.s32 %s159, %s19
    %s161 = smul.u32 %s34, 4
    %s162 = smul.u32 %s30, 2
    %s163 = sadd.s32 %s161, %s162
    %s164 = sadd.s32 %s163, 1
    %s165 = ssub.s32 %s164, %s38
    %s166 = ssub.s32 %s160, %s165
    %p167 = scmp.eq.s32.totalorder %s166, 0
    %s169 = sadd.s32 %s168, 1
    %s170 = scalar_select %p167, %s168, %s169
    %p173 = pneg %p167
    %p174 = scmp.eq.s32.totalorder %s12, 7
    %p175 = por %p173, %p174
    %p176 = scmp.ne.s32.totalorder %s168, %s171
    %p177 = scmp.eq.s32.totalorder %s12, 0
    %p178 = por %p176, %p177
    %p179 = scmp.ne.s32.totalorder %s168, %s171
    %p180 = scmp.eq.s32.totalorder %s17, 7
    %p181 = por %p179, %p180
    %p182 = scmp.ne.s32.totalorder %s171, %s172
    %p183 = scmp.eq.s32.totalorder %s17, 0
    %p184 = por %p182, %p183
    %p185 = scmp.ne.s32.totalorder %s171, %s172
    %p186 = scmp.eq.s32.totalorder %s18, 7
    %p187 = por %p185, %p186
    %p189 = scmp.ne.s32.totalorder %s172, %s188
    %p190 = scmp.eq.s32.totalorder %s18, 0
    %p191 = por %p189, %p190
    %s192 = smul.u32 %s20, 4
    %s193 = smul.u32 %s21, 2
    %s194 = sadd.s32 %s192, %s193
    %s195 = sadd.s32 %s194, 1
    %s196 = ssub.s32 %s195, %s19
    %s197 = smul.u32 %s34, 4
    %s198 = smul.u32 %s30, 2
    %s199 = sadd.s32 %s197, %s198
    %s200 = sadd.s32 %s199, 1
    %s201 = ssub.s32 %s200, %s38
    %s202 = ssub.s32 %s196, %s201
    %p203 = scmp.eq.s32.totalorder %s202, 0
    %s205 = sadd.s32 %s204, 1
    %s206 = scalar_select %p203, %s204, %s205
    %p209 = pneg %p203
    %p210 = scmp.eq.s32.totalorder %s12, 7
    %p211 = por %p209, %p210
    %p212 = scmp.ne.s32.totalorder %s204, %s207
    %p213 = scmp.eq.s32.totalorder %s12, 0
    %p214 = por %p212, %p213
    %p215 = scmp.ne.s32.totalorder %s204, %s207
    %p216 = scmp.eq.s32.totalorder %s17, 7
    %p217 = por %p215, %p216
    %p218 = scmp.ne.s32.totalorder %s207, %s208
    %p219 = scmp.eq.s32.totalorder %s17, 0
    %p220 = por %p218, %p219
    %p221 = scmp.ne.s32.totalorder %s207, %s208
    %p222 = scmp.eq.s32.totalorder %s18, 7
    %p223 = por %p221, %p222
    %p225 = scmp.ne.s32.totalorder %s208, %s224
    %p226 = scmp.eq.s32.totalorder %s18, 0
    %p227 = por %p225, %p226
    %p228 = scmp.le.s32.totalorder 1, %s12
    %p229 = scmp.lt.s32.totalorder %s12, 9
    %p230 = pnand %p228, %p229
    %p231 = pneg %p230
    // Predicated region
    $region9: #{fcn32_forward.3} parent=5 // pred_check
      _
    $region10: #{fcn32_forward.3} parent=5 // pred_check_branch
      %233 = sbr.rel (%p230) target = $region12
    $region11: #{fcn32_forward.3} parent=5 // pred_region
      %s234 = ssub.s32 %s12, 1
      // Predicated region
      $region13: #{fcn32_forward.3} parent=11 // pred_check
        %p235 = pneg %p148
      $region14: #{fcn32_forward.3} parent=11 // pred_check_branch
        %237 = sbr.rel (%p235) target = $region16
      $region15: #{fcn32_forward.3} parent=11 // pred_region
        _
      $region16: #{fcn32_forward.3} parent=11 // pred_fallthru
        _
    $region12: #{fcn32_forward.3} parent=5 // pred_fallthru
      _
    %p238 = scmp.lt.s32.totalorder %s12, 8
    // Predicated region
    $region17: #{fcn32_forward.3} parent=5 // pred_check
      %p239 = pneg %p238
    $region18: #{fcn32_forward.3} parent=5 // pred_check_branch
      %241 = sbr.rel (%p239) target = $region20
    $region19: #{fcn32_forward.3} parent=5 // pred_region
      // Predicated region
      $region21: #{fcn32_forward.3} parent=19 // pred_check
        %p242 = pneg %p61
      $region22: #{fcn32_forward.3} parent=19 // pred_check_branch
        %244 = sbr.rel (%p242) target = $region24
      $region23: #{fcn32_forward.3} parent=19 // pred_region
        %s245 = sadd.s32 %s21, 1
        %s246 = ssub.s32 %s245, %s19
        %p247 = scmp.lt.s32.totalorder %s246, 1
        %s248 = scalar_select %p247, %s246, 1
        %p249 = scmp.lt.s32.totalorder %s20, 1
        %s250 = scalar_select %p249, %s20, 1
        %p251 = scmp.lt.s32.totalorder %s248, 1
        %s252 = scalar_select %p251, %s248, 1
        %s253 = smul.addr %s250, 2
        %s254 = sadd.s32 %s252, %s253
        %s255 = smul.addr %s254, 2
        %s256 = scalar_lea.vmem %s0, %s255
        %s257 = sadd.s32 %s21, 1
        %s258 = ssub.s32 %s257, %s19
        %p259 = scmp.lt.s32.totalorder %s258, 1
        %s260 = scalar_select %p259, %s258, 1
      $region24: #{fcn32_forward.3} parent=19 // pred_fallthru
        _
      // Predicated region
      $region25: #{fcn32_forward.3} parent=19 // pred_check
        %p261 = pneg %p95
      $region26: #{fcn32_forward.3} parent=19 // pred_check_branch
        %263 = sbr.rel (%p261) target = $region28
      $region27: #{fcn32_forward.3} parent=19 // pred_region
        %s264 = ssub.s32 %s21, %s19
        %p265 = scmp.gt.s32.totalorder %s264, 0
        %s266 = scalar_select %p265, %s264, 0
        %p267 = scmp.lt.s32.totalorder %s20, 1
        %s268 = scalar_select %p267, %s20, 1
        %p269 = scmp.lt.s32.totalorder %s266, 1
        %s270 = scalar_select %p269, %s266, 1
        %s271 = smul.addr %s268, 2
        %s272 = sadd.s32 %s270, %s271
        %s273 = smul.addr %s272, 2
        %s274 = scalar_lea.vmem %s1, %s273
        %s275 = ssub.s32 %s21, %s19
        %p276 = scmp.gt.s32.totalorder %s275, 0
        %s277 = scalar_select %p276, %s275, 0
      $region28: #{fcn32_forward.3} parent=19 // pred_fallthru
        _
      // Predicated region
      $region29: #{fcn32_forward.3} parent=19 // pred_check
        %p278 = pneg %p121
      $region30: #{fcn32_forward.3} parent=19 // pred_check_branch
        %280 = sbr.rel (%p278) target = $region32
      $region31: #{fcn32_forward.3} parent=19 // pred_region
        %p281 = scmp.lt.s32.totalorder %s19, 1
        %s282 = scalar_select %p281, %s19, 1
        %s283 = smul.addr %s282, 128
        %s284 = smul.addr %s283, 4
        %s285 = scalar_lea.vmem %s2, %s284
      $region32: #{fcn32_forward.3} parent=19 // pred_fallthru
        _
    $region20: #{fcn32_forward.3} parent=5 // pred_fallthru
      _
    %p286 = scmp.le.s32.totalorder 1, %s12
    %p287 = scmp.lt.s32.totalorder %s12, 9
    %p288 = pnand %p286, %p287
    %p289 = pneg %p288
    // Predicated region
    $region33: #{fcn32_forward.3} parent=5 // pred_check
      _
    $region34: #{fcn32_forward.3} parent=5 // pred_check_branch
      %291 = sbr.rel (%p288) target = $region36
    $region35: #{fcn32_forward.3} parent=5 // pred_region
      %s292 = ssub.s32 %s12, 1
      %s293 = sadd.s32 %s24, 1
      %s294 = ssub.s32 %s293, %s22
      %p295 = scmp.lt.s32.totalorder %s294, 1
      %s296 = scalar_select %p295, %s294, 1
      %p297 = scmp.lt.s32.totalorder %s23, 1
      %s298 = scalar_select %p297, %s23, 1
      %p299 = scmp.lt.s32.totalorder %s296, 1
      %s300 = scalar_select %p299, %s296, 1
      %s301 = smul.addr %s298, 2
      %s302 = sadd.s32 %s300, %s301
      %s303 = smul.addr %s302, 2
      %s304 = scalar_lea.vmem %s0, %s303
      %p305 = pneg %p67
      %p306 = pneg %p64
      %s307 = ssub.s32 %s24, %s22
      %p308 = scmp.gt.s32.totalorder %s307, 0
      %s309 = scalar_select %p308, %s307, 0
      %p310 = scmp.lt.s32.totalorder %s23, 1
      %s311 = scalar_select %p310, %s23, 1
      %p312 = scmp.lt.s32.totalorder %s309, 1
      %s313 = scalar_select %p312, %s309, 1
      %s314 = smul.addr %s311, 2
      %s315 = sadd.s32 %s313, %s314
      %s316 = smul.addr %s315, 2
      %s317 = scalar_lea.vmem %s1, %s316
      %p318 = pneg %p101
      %p319 = pneg %p98
      %p320 = scmp.lt.s32.totalorder %s22, 1
      %s321 = scalar_select %p320, %s22, 1
      %s322 = smul.addr %s321, 128
      %s323 = smul.addr %s322, 4
      %s324 = scalar_lea.vmem %s2, %s323
      %p325 = pneg %p127
      %p326 = pneg %p124
      %p327 = pneg %p148
      %p328 = pneg %p145
      %p329 = pneg %p184
      %p330 = pneg %p181
      %s331 = smul.u32 %s23, 4
      %s332 = smul.u32 %s24, 2
      %s333 = sadd.s32 %s331, %s332
      %s334 = sadd.s32 %s333, 1
      %s335 = ssub.s32 %s334, %s22
      %s336 = smul.u32 2, %s335
      %p337 = scmp.lt.s32.totalorder %s336, 15
      %s338 = scalar_select %p337, %s336, 15
      %s339 = smul.addr %s338, 4
      %s340 = smul.addr %s339, 8
      %s341 = scalar_lea.vmem %s4, %s340
      %p342 = pneg %p220
      %p343 = pneg %p217
      %s344 = smul.u32 %s23, 4
      %s345 = smul.u32 %s24, 2
      %s346 = sadd.s32 %s344, %s345
      %s347 = sadd.s32 %s346, 1
      %s348 = ssub.s32 %s347, %s22
      %p349 = scmp.lt.s32.totalorder %s348, 7
      %s350 = scalar_select %p349, %s348, 7
      %s351 = smul.addr %s350, 4
      %s352 = smul.addr %s351, 2
      %s353 = scalar_lea.vmem %s5, %s352
      %s354 = sadd.s32 %s24, 1
      %s355 = ssub.s32 %s354, %s22
      %p356 = scmp.lt.s32.totalorder %s355, 1
      %s357 = scalar_select %p356, %s355, 1
      %p358 = scmp.lt.s32.totalorder %s23, 1
      %s359 = scalar_select %p358, %s23, 1
      %p360 = scmp.lt.s32.totalorder %s357, 1
      %s361 = scalar_select %p360, %s357, 1
      %s362 = smul.addr %s359, 2
      %s363 = sadd.s32 %s361, %s362
      %s364 = smul.addr %s363, 2
      %s365 = scalar_lea.vmem %s0, %s364
      %s366 = sadd.s32 %s24, 1
      %s367 = ssub.s32 %s366, %s22
      %p368 = scmp.lt.s32.totalorder %s367, 1
      %s369 = scalar_select %p368, %s367, 1
      %s370 = ssub.s32 %s24, %s22
      %p371 = scmp.gt.s32.totalorder %s370, 0
      %s372 = scalar_select %p371, %s370, 0
      %p373 = scmp.lt.s32.totalorder %s23, 1
      %s374 = scalar_select %p373, %s23, 1
      %p375 = scmp.lt.s32.totalorder %s372, 1
      %s376 = scalar_select %p375, %s372, 1
      %s377 = smul.addr %s374, 2
      %s378 = sadd.s32 %s376, %s377
      %s379 = smul.addr %s378, 2
      %s380 = scalar_lea.vmem %s1, %s379
      %s381 = ssub.s32 %s24, %s22
      %p382 = scmp.gt.s32.totalorder %s381, 0
      %s383 = scalar_select %p382, %s381, 0
      %p384 = scmp.lt.s32.totalorder %s22, 1
      %s385 = scalar_select %p384, %s22, 1
      %s386 = smul.addr %s385, 128
      %s387 = smul.addr %s386, 4
      %s388 = scalar_lea.vmem %s2, %s387
      %s389 = smul.u32 %s23, 4
      %s390 = smul.u32 %s24, 2
      %s391 = sadd.s32 %s389, %s390
      %s392 = sadd.s32 %s391, 1
      %s393 = ssub.s32 %s392, %s22
      %s394 = smul.u32 2, %s393
      %p395 = scmp.lt.s32.totalorder %s394, 15
      %s396 = scalar_select %p395, %s394, 15
      %s397 = smul.addr %s396, 4
      %s398 = smul.addr %s397, 8
      %s399 = scalar_lea.vmem %s4, %s398
      %s400 = smul.u32 %s23, 4
      %s401 = smul.u32 %s24, 2
      %s402 = sadd.s32 %s400, %s401
      %s403 = sadd.s32 %s402, 1
      %s404 = ssub.s32 %s403, %s22
      %s405 = smul.u32 2, %s404
      %s406 = smul.u32 %s23, 4
      %s407 = smul.u32 %s24, 2
      %s408 = sadd.s32 %s406, %s407
      %s409 = sadd.s32 %s408, 1
      %s410 = ssub.s32 %s409, %s22
      %p411 = scmp.lt.s32.totalorder %s410, 7
      %s412 = scalar_select %p411, %s410, 7
      %s413 = smul.addr %s412, 4
      %s414 = smul.addr %s413, 2
      %s415 = scalar_lea.vmem %s5, %s414
      %s416 = smul.u32 %s23, 4
      %s417 = smul.u32 %s24, 2
      %s418 = sadd.s32 %s416, %s417
      %s419 = sadd.s32 %s418, 1
      %s420 = ssub.s32 %s419, %s22
      %s422 = sadd.s32 %s24, 1
      %s423 = ssub.s32 %s422, %s22
      %p424 = scmp.le.s32.totalorder %s423, 1
      %s425 = scalar_select %p424, 1, 0
      %s426 = scvt.s32.f32 %s425
      %p427 = scmp.ge.s32.totalorder %s423, 1
      %s428 = scalar_select %p427, 1, 0
      %s429 = scvt.s32.f32 %s428
      %v430 = vld [vmem:[%s365] sm:$0x3]
      %v431 = vstv %s426
      %v432 = vmul.f32 %v430, %v431
      %v433 = vld [vmem:[%s380] sm:$0x3]
      %v434 = vstv %s429
      %v435 = vmul.f32 %v433, %v434
      %437 = vrot.lane.b32.xlu0 %v435, 8
      %v438 = vpop.permute.xlu0 %437
      %vm440 = vcmask 64512
      %v441 = vsel %vm440, %v432, %v438
      %v442 = vpack.c.bf16 %v441, %v441
      %v443 = vld [vmem:[%s388] sm:$0xff]
      %v444 = vld [vmem:[%s388 + $0x8] sm:$0xff]
      %v445 = vld [vmem:[%s388 + $0x10] sm:$0xff]
      %v446 = vld [vmem:[%s388 + $0x18] sm:$0xff]
      %v447 = vld [vmem:[%s388 + $0x20] sm:$0xff]
      %v448 = vld [vmem:[%s388 + $0x28] sm:$0xff]
      %v449 = vld [vmem:[%s388 + $0x30] sm:$0xff]
      %v450 = vld [vmem:[%s388 + $0x38] sm:$0xff]
      %v451 = vld [vmem:[%s388 + $0x40] sm:$0xff]
      %v452 = vld [vmem:[%s388 + $0x48] sm:$0xff]
      %v453 = vld [vmem:[%s388 + $0x50] sm:$0xff]
      %v454 = vld [vmem:[%s388 + $0x58] sm:$0xff]
      %v455 = vld [vmem:[%s388 + $0x60] sm:$0xff]
      %v456 = vld [vmem:[%s388 + $0x68] sm:$0xff]
      %v457 = vld [vmem:[%s388 + $0x70] sm:$0xff]
      %v458 = vld [vmem:[%s388 + $0x78] sm:$0xff]
      %v459 = vld [vmem:[%s388 + $0x80] sm:$0xff]
      %v460 = vld [vmem:[%s388 + $0x88] sm:$0xff]
      %v461 = vld [vmem:[%s388 + $0x90] sm:$0xff]
      %v462 = vld [vmem:[%s388 + $0x98] sm:$0xff]
      %v463 = vld [vmem:[%s388 + $0xa0] sm:$0xff]
      %v464 = vld [vmem:[%s388 + $0xa8] sm:$0xff]
      %v465 = vld [vmem:[%s388 + $0xb0] sm:$0xff]
      %v466 = vld [vmem:[%s388 + $0xb8] sm:$0xff]
      %v467 = vld [vmem:[%s388 + $0xc0] sm:$0xff]
      %v468 = vld [vmem:[%s388 + $0xc8] sm:$0xff]
      %v469 = vld [vmem:[%s388 + $0xd0] sm:$0xff]
      %v470 = vld [vmem:[%s388 + $0xd8] sm:$0xff]
      %v471 = vld [vmem:[%s388 + $0xe0] sm:$0xff]
      %v472 = vld [vmem:[%s388 + $0xe8] sm:$0xff]
      %v473 = vld [vmem:[%s388 + $0xf0] sm:$0xff]
      %v474 = vld [vmem:[%s388 + $0xf8] sm:$0xff]
      %v475 = vld [vmem:[%s388 + $0x100] sm:$0xff]
      %v476 = vld [vmem:[%s388 + $0x108] sm:$0xff]
      %v477 = vld [vmem:[%s388 + $0x110] sm:$0xff]
      %v478 = vld [vmem:[%s388 + $0x118] sm:$0xff]
      %v479 = vld [vmem:[%s388 + $0x120] sm:$0xff]
      %v480 = vld [vmem:[%s388 + $0x128] sm:$0xff]
      %v481 = vld [vmem:[%s388 + $0x130] sm:$0xff]
      %v482 = vld [vmem:[%s388 + $0x138] sm:$0xff]
      %v483 = vld [vmem:[%s388 + $0x140] sm:$0xff]
      %v484 = vld [vmem:[%s388 + $0x148] sm:$0xff]
      %v485 = vld [vmem:[%s388 + $0x150] sm:$0xff]
      %v486 = vld [vmem:[%s388 + $0x158] sm:$0xff]
      %v487 = vld [vmem:[%s388 + $0x160] sm:$0xff]
      %v488 = vld [vmem:[%s388 + $0x168] sm:$0xff]
      %v489 = vld [vmem:[%s388 + $0x170] sm:$0xff]
      %v490 = vld [vmem:[%s388 + $0x178] sm:$0xff]
      %v491 = vld [vmem:[%s388 + $0x180] sm:$0xff]
      %v492 = vld [vmem:[%s388 + $0x188] sm:$0xff]
      %v493 = vld [vmem:[%s388 + $0x190] sm:$0xff]
      %v494 = vld [vmem:[%s388 + $0x198] sm:$0xff]
      %v495 = vld [vmem:[%s388 + $0x1a0] sm:$0xff]
      %v496 = vld [vmem:[%s388 + $0x1a8] sm:$0xff]
      %v497 = vld [vmem:[%s388 + $0x1b0] sm:$0xff]
      %v498 = vld [vmem:[%s388 + $0x1b8] sm:$0xff]
      %v499 = vld [vmem:[%s388 + $0x1c0] sm:$0xff]
      %v500 = vld [vmem:[%s388 + $0x1c8] sm:$0xff]
      %v501 = vld [vmem:[%s388 + $0x1d0] sm:$0xff]
      %v502 = vld [vmem:[%s388 + $0x1d8] sm:$0xff]
      %v503 = vld [vmem:[%s388 + $0x1e0] sm:$0xff]
      %v504 = vld [vmem:[%s388 + $0x1e8] sm:$0xff]
      %v505 = vld [vmem:[%s388 + $0x1f0] sm:$0xff]
      %v506 = vld [vmem:[%s388 + $0x1f8] sm:$0xff]
      %v571 = vunpack.c.l.b16 %v443
      %v572 = vunpack.c.h.b16 %v443
      %v573 = vunpack.c.l.b16 %v444
      %v574 = vunpack.c.h.b16 %v444
      %v575 = vunpack.c.l.b16 %v445
      %v576 = vunpack.c.h.b16 %v445
      %v577 = vunpack.c.l.b16 %v446
      %v578 = vunpack.c.h.b16 %v446
      %v579 = vunpack.c.l.b16 %v447
      %v580 = vunpack.c.h.b16 %v447
      %v581 = vunpack.c.l.b16 %v448
      %v582 = vunpack.c.h.b16 %v448
      %v583 = vunpack.c.l.b16 %v449
      %v584 = vunpack.c.h.b16 %v449
      %v585 = vunpack.c.l.b16 %v450
      %v586 = vunpack.c.h.b16 %v450
      %v587 = vunpack.c.l.b16 %v451
      %v588 = vunpack.c.h.b16 %v451
      %v589 = vunpack.c.l.b16 %v452
      %v590 = vunpack.c.h.b16 %v452
      %v591 = vunpack.c.l.b16 %v453
      %v592 = vunpack.c.h.b16 %v453
      %v593 = vunpack.c.l.b16 %v454
      %v594 = vunpack.c.h.b16 %v454
      %v595 = vunpack.c.l.b16 %v455
      %v596 = vunpack.c.h.b16 %v455
      %v597 = vunpack.c.l.b16 %v456
      %v598 = vunpack.c.h.b16 %v456
      %v599 = vunpack.c.l.b16 %v457
      %v600 = vunpack.c.h.b16 %v457
      %v601 = vunpack.c.l.b16 %v458
      %v602 = vunpack.c.h.b16 %v458
      %v603 = vunpack.c.l.b16 %v459
      %v604 = vunpack.c.h.b16 %v459
      %v605 = vunpack.c.l.b16 %v460
      %v606 = vunpack.c.h.b16 %v460
      %v607 = vunpack.c.l.b16 %v461
      %v608 = vunpack.c.h.b16 %v461
      %v609 = vunpack.c.l.b16 %v462
      %v610 = vunpack.c.h.b16 %v462
      %v611 = vunpack.c.l.b16 %v463
      %v612 = vunpack.c.h.b16 %v463
      %v613 = vunpack.c.l.b16 %v464
      %v614 = vunpack.c.h.b16 %v464
      %v615 = vunpack.c.l.b16 %v465
      %v616 = vunpack.c.h.b16 %v465
      %v617 = vunpack.c.l.b16 %v466
      %v618 = vunpack.c.h.b16 %v466
      %v619 = vunpack.c.l.b16 %v467
      %v620 = vunpack.c.h.b16 %v467
      %v621 = vunpack.c.l.b16 %v468
      %v622 = vunpack.c.h.b16 %v468
      %v623 = vunpack.c.l.b16 %v469
      %v624 = vunpack.c.h.b16 %v469
      %v625 = vunpack.c.l.b16 %v470
      %v626 = vunpack.c.h.b16 %v470
      %v627 = vunpack.c.l.b16 %v471
      %v628 = vunpack.c.h.b16 %v471
      %v629 = vunpack.c.l.b16 %v472
      %v630 = vunpack.c.h.b16 %v472
      %v631 = vunpack.c.l.b16 %v473
      %v632 = vunpack.c.h.b16 %v473
      %v633 = vunpack.c.l.b16 %v474
      %v634 = vunpack.c.h.b16 %v474
      %v635 = vunpack.c.l.b16 %v475
      %v636 = vunpack.c.h.b16 %v475
      %v637 = vunpack.c.l.b16 %v476
      %v638 = vunpack.c.h.b16 %v476
      %v639 = vunpack.c.l.b16 %v477
      %v640 = vunpack.c.h.b16 %v477
      %v641 = vunpack.c.l.b16 %v478
      %v642 = vunpack.c.h.b16 %v478
      %v643 = vunpack.c.l.b16 %v479
      %v644 = vunpack.c.h.b16 %v479
      %v645 = vunpack.c.l.b16 %v480
      %v646 = vunpack.c.h.b16 %v480
      %v647 = vunpack.c.l.b16 %v481
      %v648 = vunpack.c.h.b16 %v481
      %v649 = vunpack.c.l.b16 %v482
      %v650 = vunpack.c.h.b16 %v482
      %v651 = vunpack.c.l.b16 %v483
      %v652 = vunpack.c.h.b16 %v483
      %v653 = vunpack.c.l.b16 %v484
      %v654 = vunpack.c.h.b16 %v484
      %v655 = vunpack.c.l.b16 %v485
      %v656 = vunpack.c.h.b16 %v485
      %v657 = vunpack.c.l.b16 %v486
      %v658 = vunpack.c.h.b16 %v486
      %v659 = vunpack.c.l.b16 %v487
      %v660 = vunpack.c.h.b16 %v487
      %v661 = vunpack.c.l.b16 %v488
      %v662 = vunpack.c.h.b16 %v488
      %v663 = vunpack.c.l.b16 %v489
      %v664 = vunpack.c.h.b16 %v489
      %v665 = vunpack.c.l.b16 %v490
      %v666 = vunpack.c.h.b16 %v490
      %v667 = vunpack.c.l.b16 %v491
      %v668 = vunpack.c.h.b16 %v491
      %v669 = vunpack.c.l.b16 %v492
      %v670 = vunpack.c.h.b16 %v492
      %v671 = vunpack.c.l.b16 %v493
      %v672 = vunpack.c.h.b16 %v493
      %v673 = vunpack.c.l.b16 %v494
      %v674 = vunpack.c.h.b16 %v494
      %v675 = vunpack.c.l.b16 %v495
      %v676 = vunpack.c.h.b16 %v495
      %v677 = vunpack.c.l.b16 %v496
      %v678 = vunpack.c.h.b16 %v496
      %v679 = vunpack.c.l.b16 %v497
      %v680 = vunpack.c.h.b16 %v497
      %v681 = vunpack.c.l.b16 %v498
      %v682 = vunpack.c.h.b16 %v498
      %v683 = vunpack.c.l.b16 %v499
      %v684 = vunpack.c.h.b16 %v499
      %v685 = vunpack.c.l.b16 %v500
      %v686 = vunpack.c.h.b16 %v500
      %v687 = vunpack.c.l.b16 %v501
      %v688 = vunpack.c.h.b16 %v501
      %v689 = vunpack.c.l.b16 %v502
      %v690 = vunpack.c.h.b16 %v502
      %v691 = vunpack.c.l.b16 %v503
      %v692 = vunpack.c.h.b16 %v503
      %v693 = vunpack.c.l.b16 %v504
      %v694 = vunpack.c.h.b16 %v504
      %v695 = vunpack.c.l.b16 %v505
      %v696 = vunpack.c.h.b16 %v505
      %v697 = vunpack.c.l.b16 %v506
      %v698 = vunpack.c.h.b16 %v506
      %v699 = vpack.c.b16 %v635, %v571
      %v700 = vpack.c.b16 %v636, %v572
      %v701 = vpack.c.b16 %v637, %v573
      %v702 = vpack.c.b16 %v638, %v574
      %v703 = vpack.c.b16 %v639, %v575
      %v704 = vpack.c.b16 %v640, %v576
      %v705 = vpack.c.b16 %v641, %v577
      %v706 = vpack.c.b16 %v642, %v578
      %v707 = vpack.c.b16 %v643, %v579
      %v708 = vpack.c.b16 %v644, %v580
      %v709 = vpack.c.b16 %v645, %v581
      %v710 = vpack.c.b16 %v646, %v582
      %v711 = vpack.c.b16 %v647, %v583
      %v712 = vpack.c.b16 %v648, %v584
      %v713 = vpack.c.b16 %v649, %v585
      %v714 = vpack.c.b16 %v650, %v586
      %v715 = vpack.c.b16 %v651, %v587
      %v716 = vpack.c.b16 %v652, %v588
      %v717 = vpack.c.b16 %v653, %v589
      %v718 = vpack.c.b16 %v654, %v590
      %v719 = vpack.c.b16 %v655, %v591
      %v720 = vpack.c.b16 %v656, %v592
      %v721 = vpack.c.b16 %v657, %v593
      %v722 = vpack.c.b16 %v658, %v594
      %v723 = vpack.c.b16 %v659, %v595
      %v724 = vpack.c.b16 %v660, %v596
      %v725 = vpack.c.b16 %v661, %v597
      %v726 = vpack.c.b16 %v662, %v598
      %v727 = vpack.c.b16 %v663, %v599
      %v728 = vpack.c.b16 %v664, %v600
      %v729 = vpack.c.b16 %v665, %v601
      %v730 = vpack.c.b16 %v666, %v602
      %v731 = vpack.c.b16 %v667, %v603
      %v732 = vpack.c.b16 %v668, %v604
      %v733 = vpack.c.b16 %v669, %v605
      %v734 = vpack.c.b16 %v670, %v606
      %v735 = vpack.c.b16 %v671, %v607
      %v736 = vpack.c.b16 %v672, %v608
      %v737 = vpack.c.b16 %v673, %v609
      %v738 = vpack.c.b16 %v674, %v610
      %v739 = vpack.c.b16 %v675, %v611
      %v740 = vpack.c.b16 %v676, %v612
      %v741 = vpack.c.b16 %v677, %v613
      %v742 = vpack.c.b16 %v678, %v614
      %v743 = vpack.c.b16 %v679, %v615
      %v744 = vpack.c.b16 %v680, %v616
      %v745 = vpack.c.b16 %v681, %v617
      %v746 = vpack.c.b16 %v682, %v618
      %v747 = vpack.c.b16 %v683, %v619
      %v748 = vpack.c.b16 %v684, %v620
      %v749 = vpack.c.b16 %v685, %v621
      %v750 = vpack.c.b16 %v686, %v622
      %v751 = vpack.c.b16 %v687, %v623
      %v752 = vpack.c.b16 %v688, %v624
      %v753 = vpack.c.b16 %v689, %v625
      %v754 = vpack.c.b16 %v690, %v626
      %v755 = vpack.c.b16 %v691, %v627
      %v756 = vpack.c.b16 %v692, %v628
      %v757 = vpack.c.b16 %v693, %v629
      %v758 = vpack.c.b16 %v694, %v630
      %v759 = vpack.c.b16 %v695, %v631
      %v760 = vpack.c.b16 %v696, %v632
      %v761 = vpack.c.b16 %v697, %v633
      %v762 = vpack.c.b16 %v698, %v634
      %vm827 = vcmask 130048
      %v829 = vsel %vm827, %v442, 0
      %831 = vmatpush.bf16.msra.mxu0 0
      %832 = vmatpush.bf16.msra.mxu0 0
      %833 = vmatpush.bf16.msra.mxu0 0
      %834 = vmatpush.bf16.msra.mxu0 0
      %835 = vmatpush.bf16.msra.mxu0 0
      %836 = vmatpush.bf16.msra.mxu0 0
      %837 = vmatpush.bf16.msra.mxu0 0
      %838 = vmatpush.bf16.msra.mxu0 %v699
      %839 = vmatmul.bf16.gmra.mxu0 %v829
      %v840 = vpop.f32.mrf.mxu0
      %v841 = vadd.f32 0.0, %v840
      %v842 = vpop.f32.mrf.mxu0
      %843 = vdwg.mxu0
      %844 = vmatpush.bf16.msra.mxu0 0
      %845 = vmatpush.bf16.msra.mxu0 0
      %846 = vmatpush.bf16.msra.mxu0 0
      %847 = vmatpush.bf16.msra.mxu0 0
      %848 = vmatpush.bf16.msra.mxu0 0
      %849 = vmatpush.bf16.msra.mxu0 0
      %850 = vmatpush.bf16.msra.mxu0 0
      %851 = vmatpush.bf16.msra.mxu0 %v700
      %852 = vmatmul.bf16.gmra.mxu0 %v829
      %v853 = vpop.f32.mrf.mxu0
      %v854 = vadd.f32 0.0, %v853
      %v855 = vpop.f32.mrf.mxu0
      %856 = vdwg.mxu0
      %857 = vmatpush.bf16.msra.mxu0 0
      %858 = vmatpush.bf16.msra.mxu0 0
      %859 = vmatpush.bf16.msra.mxu0 0
      %860 = vmatpush.bf16.msra.mxu0 0
      %861 = vmatpush.bf16.msra.mxu0 0
      %862 = vmatpush.bf16.msra.mxu0 0
      %863 = vmatpush.bf16.msra.mxu0 0
      %864 = vmatpush.bf16.msra.mxu0 %v701
      %865 = vmatmul.bf16.gmra.mxu0 %v829
      %v866 = vpop.f32.mrf.mxu0
      %v867 = vadd.f32 0.0, %v866
      %v868 = vpop.f32.mrf.mxu0
      %869 = vdwg.mxu0
      %870 = vmatpush.bf16.msra.mxu0 0
      %871 = vmatpush.bf16.msra.mxu0 0
      %872 = vmatpush.bf16.msra.mxu0 0
      %873 = vmatpush.bf16.msra.mxu0 0
      %874 = vmatpush.bf16.msra.mxu0 0
      %875 = vmatpush.bf16.msra.mxu0 0
      %876 = vmatpush.bf16.msra.mxu0 0
      %877 = vmatpush.bf16.msra.mxu0 %v702
      %878 = vmatmul.bf16.gmra.mxu0 %v829
      %v879 = vpop.f32.mrf.mxu0
      %v880 = vadd.f32 0.0, %v879
      %v881 = vpop.f32.mrf.mxu0
      %882 = vdwg.mxu0
      %883 = vmatpush.bf16.msra.mxu0 0
      %884 = vmatpush.bf16.msra.mxu0 0
      %885 = vmatpush.bf16.msra.mxu0 0
      %886 = vmatpush.bf16.msra.mxu0 0
      %887 = vmatpush.bf16.msra.mxu0 0
      %888 = vmatpush.bf16.msra.mxu0 0
      %889 = vmatpush.bf16.msra.mxu0 0
      %890 = vmatpush.bf16.msra.mxu0 %v703
      %891 = vmatmul.bf16.gmra.mxu0 %v829
      %v892 = vpop.f32.mrf.mxu0
      %v893 = vadd.f32 0.0, %v892
      %v894 = vpop.f32.mrf.mxu0
      %895 = vdwg.mxu0
      %896 = vmatpush.bf16.msra.mxu0 0
      %897 = vmatpush.bf16.msra.mxu0 0
      %898 = vmatpush.bf16.msra.mxu0 0
      %899 = vmatpush.bf16.msra.mxu0 0
      %900 = vmatpush.bf16.msra.mxu0 0
      %901 = vmatpush.bf16.msra.mxu0 0
      %902 = vmatpush.bf16.msra.mxu0 0
      %903 = vmatpush.bf16.msra.mxu0 %v704
      %904 = vmatmul.bf16.gmra.mxu0 %v829
      %v905 = vpop.f32.mrf.mxu0
      %v906 = vadd.f32 0.0, %v905
      %v907 = vpop.f32.mrf.mxu0
      %908 = vdwg.mxu0
      %909 = vmatpush.bf16.msra.mxu0 0
      %910 = vmatpush.bf16.msra.mxu0 0
      %911 = vmatpush.bf16.msra.mxu0 0
      %912 = vmatpush.bf16.msra.mxu0 0
      %913 = vmatpush.bf16.msra.mxu0 0
      %914 = vmatpush.bf16.msra.mxu0 0
      %915 = vmatpush.bf16.msra.mxu0 0
      %916 = vmatpush.bf16.msra.mxu0 %v705
      %917 = vmatmul.bf16.gmra.mxu0 %v829
      %v918 = vpop.f32.mrf.mxu0
      %v919 = vadd.f32 0.0, %v918
      %v920 = vpop.f32.mrf.mxu0
      %921 = vdwg.mxu0
      %922 = vmatpush.bf16.msra.mxu0 0
      %923 = vmatpush.bf16.msra.mxu0 0
      %924 = vmatpush.bf16.msra.mxu0 0
      %925 = vmatpush.bf16.msra.mxu0 0
      %926 = vmatpush.bf16.msra.mxu0 0
      %927 = vmatpush.bf16.msra.mxu0 0
      %928 = vmatpush.bf16.msra.mxu0 0
      %929 = vmatpush.bf16.msra.mxu0 %v706
      %930 = vmatmul.bf16.gmra.mxu0 %v829
      %v931 = vpop.f32.mrf.mxu0
      %v932 = vadd.f32 0.0, %v931
      %v933 = vpop.f32.mrf.mxu0
      %934 = vdwg.mxu0
      %935 = vmatpush.bf16.msra.mxu0 0
      %936 = vmatpush.bf16.msra.mxu0 0
      %937 = vmatpush.bf16.msra.mxu0 0
      %938 = vmatpush.bf16.msra.mxu0 0
      %939 = vmatpush.bf16.msra.mxu0 0
      %940 = vmatpush.bf16.msra.mxu0 0
      %941 = vmatpush.bf16.msra.mxu0 0
      %942 = vmatpush.bf16.msra.mxu0 %v707
      %943 = vmatmul.bf16.gmra.mxu0 %v829
      %v944 = vpop.f32.mrf.mxu0
      %v945 = vadd.f32 0.0, %v944
      %v946 = vpop.f32.mrf.mxu0
      %947 = vdwg.mxu0
      %948 = vmatpush.bf16.msra.mxu0 0
      %949 = vmatpush.bf16.msra.mxu0 0
      %950 = vmatpush.bf16.msra.mxu0 0
      %951 = vmatpush.bf16.msra.mxu0 0
      %952 = vmatpush.bf16.msra.mxu0 0
      %953 = vmatpush.bf16.msra.mxu0 0
      %954 = vmatpush.bf16.msra.mxu0 0
      %955 = vmatpush.bf16.msra.mxu0 %v708
      %956 = vmatmul.bf16.gmra.mxu0 %v829
      %v957 = vpop.f32.mrf.mxu0
      %v958 = vadd.f32 0.0, %v957
      %v959 = vpop.f32.mrf.mxu0
      %960 = vdwg.mxu0
      %961 = vmatpush.bf16.msra.mxu0 0
      %962 = vmatpush.bf16.msra.mxu0 0
      %963 = vmatpush.bf16.msra.mxu0 0
      %964 = vmatpush.bf16.msra.mxu0 0
      %965 = vmatpush.bf16.msra.mxu0 0
      %966 = vmatpush.bf16.msra.mxu0 0
      %967 = vmatpush.bf16.msra.mxu0 0
      %968 = vmatpush.bf16.msra.mxu0 %v709
      %969 = vmatmul.bf16.gmra.mxu0 %v829
      %v970 = vpop.f32.mrf.mxu0
      %v971 = vadd.f32 0.0, %v970
      %v972 = vpop.f32.mrf.mxu0
      %973 = vdwg.mxu0
      %974 = vmatpush.bf16.msra.mxu0 0
      %975 = vmatpush.bf16.msra.mxu0 0
      %976 = vmatpush.bf16.msra.mxu0 0
      %977 = vmatpush.bf16.msra.mxu0 0
      %978 = vmatpush.bf16.msra.mxu0 0
      %979 = vmatpush.bf16.msra.mxu0 0
      %980 = vmatpush.bf16.msra.mxu0 0
      %981 = vmatpush.bf16.msra.mxu0 %v710
      %982 = vmatmul.bf16.gmra.mxu0 %v829
      %v983 = vpop.f32.mrf.mxu0
      %v984 = vadd.f32 0.0, %v983
      %v985 = vpop.f32.mrf.mxu0
      %986 = vdwg.mxu0
      %987 = vmatpush.bf16.msra.mxu0 0
      %988 = vmatpush.bf16.msra.mxu0 0
      %989 = vmatpush.bf16.msra.mxu0 0
      %990 = vmatpush.bf16.msra.mxu0 0
      %991 = vmatpush.bf16.msra.mxu0 0
      %992 = vmatpush.bf16.msra.mxu0 0
      %993 = vmatpush.bf16.msra.mxu0 0
      %994 = vmatpush.bf16.msra.mxu0 %v711
      %995 = vmatmul.bf16.gmra.mxu0 %v829
      %v996 = vpop.f32.mrf.mxu0
      %v997 = vadd.f32 0.0, %v996
      %v998 = vpop.f32.mrf.mxu0
      %999 = vdwg.mxu0
      %1000 = vmatpush.bf16.msra.mxu0 0
      %1001 = vmatpush.bf16.msra.mxu0 0
      %1002 = vmatpush.bf16.msra.mxu0 0
      %1003 = vmatpush.bf16.msra.mxu0 0
      %1004 = vmatpush.bf16.msra.mxu0 0
      %1005 = vmatpush.bf16.msra.mxu0 0
      %1006 = vmatpush.bf16.msra.mxu0 0
      %1007 = vmatpush.bf16.msra.mxu0 %v712
      %1008 = vmatmul.bf16.gmra.mxu0 %v829
      %v1009 = vpop.f32.mrf.mxu0
      %v1010 = vadd.f32 0.0, %v1009
      %v1011 = vpop.f32.mrf.mxu0
      %1012 = vdwg.mxu0
      %1013 = vmatpush.bf16.msra.mxu0 0
      %1014 = vmatpush.bf16.msra.mxu0 0
      %1015 = vmatpush.bf16.msra.mxu0 0
      %1016 = vmatpush.bf16.msra.mxu0 0
      %1017 = vmatpush.bf16.msra.mxu0 0
      %1018 = vmatpush.bf16.msra.mxu0 0
      %1019 = vmatpush.bf16.msra.mxu0 0
      %1020 = vmatpush.bf16.msra.mxu0 %v713
      %1021 = vmatmul.bf16.gmra.mxu0 %v829
      %v1022 = vpop.f32.mrf.mxu0
      %v1023 = vadd.f32 0.0, %v1022
      %v1024 = vpop.f32.mrf.mxu0
      %1025 = vdwg.mxu0
      %1026 = vmatpush.bf16.msra.mxu0 0
      %1027 = vmatpush.bf16.msra.mxu0 0
      %1028 = vmatpush.bf16.msra.mxu0 0
      %1029 = vmatpush.bf16.msra.mxu0 0
      %1030 = vmatpush.bf16.msra.mxu0 0
      %1031 = vmatpush.bf16.msra.mxu0 0
      %1032 = vmatpush.bf16.msra.mxu0 0
      %1033 = vmatpush.bf16.msra.mxu0 %v714
      %1034 = vmatmul.bf16.gmra.mxu0 %v829
      %v1035 = vpop.f32.mrf.mxu0
      %v1036 = vadd.f32 0.0, %v1035
      %v1037 = vpop.f32.mrf.mxu0
      %1038 = vdwg.mxu0
      %1039 = vmatpush.bf16.msra.mxu0 0
      %1040 = vmatpush.bf16.msra.mxu0 0
      %1041 = vmatpush.bf16.msra.mxu0 0
      %1042 = vmatpush.bf16.msra.mxu0 0
      %1043 = vmatpush.bf16.msra.mxu0 0
      %1044 = vmatpush.bf16.msra.mxu0 0
      %1045 = vmatpush.bf16.msra.mxu0 0
      %1046 = vmatpush.bf16.msra.mxu0 %v715
      %1047 = vmatmul.bf16.gmra.mxu0 %v829
      %v1048 = vpop.f32.mrf.mxu0
      %v1049 = vadd.f32 0.0, %v1048
      %v1050 = vpop.f32.mrf.mxu0
      %1051 = vdwg.mxu0
      %1052 = vmatpush.bf16.msra.mxu0 0
      %1053 = vmatpush.bf16.msra.mxu0 0
      %1054 = vmatpush.bf16.msra.mxu0 0
      %1055 = vmatpush.bf16.msra.mxu0 0
      %1056 = vmatpush.bf16.msra.mxu0 0
      %1057 = vmatpush.bf16.msra.mxu0 0
      %1058 = vmatpush.bf16.msra.mxu0 0
      %1059 = vmatpush.bf16.msra.mxu0 %v716
      %1060 = vmatmul.bf16.gmra.mxu0 %v829
      %v1061 = vpop.f32.mrf.mxu0
      %v1062 = vadd.f32 0.0, %v1061
      %v1063 = vpop.f32.mrf.mxu0
      %1064 = vdwg.mxu0
      %1065 = vmatpush.bf16.msra.mxu0 0
      %1066 = vmatpush.bf16.msra.mxu0 0
      %1067 = vmatpush.bf16.msra.mxu0 0
      %1068 = vmatpush.bf16.msra.mxu0 0
      %1069 = vmatpush.bf16.msra.mxu0 0
      %1070 = vmatpush.bf16.msra.mxu0 0
      %1071 = vmatpush.bf16.msra.mxu0 0
      %1072 = vmatpush.bf16.msra.mxu0 %v717
      %1073 = vmatmul.bf16.gmra.mxu0 %v829
      %v1074 = vpop.f32.mrf.mxu0
      %v1075 = vadd.f32 0.0, %v1074
      %v1076 = vpop.f32.mrf.mxu0
      %1077 = vdwg.mxu0
      %1078 = vmatpush.bf16.msra.mxu0 0
      %1079 = vmatpush.bf16.msra.mxu0 0
      %1080 = vmatpush.bf16.msra.mxu0 0
      %1081 = vmatpush.bf16.msra.mxu0 0
      %1082 = vmatpush.bf16.msra.mxu0 0
      %1083 = vmatpush.bf16.msra.mxu0 0
      %1084 = vmatpush.bf16.msra.mxu0 0
      %1085 = vmatpush.bf16.msra.mxu0 %v718
      %1086 = vmatmul.bf16.gmra.mxu0 %v829
      %v1087 = vpop.f32.mrf.mxu0
      %v1088 = vadd.f32 0.0, %v1087
      %v1089 = vpop.f32.mrf.mxu0
      %1090 = vdwg.mxu0
      %1091 = vmatpush.bf16.msra.mxu0 0
      %1092 = vmatpush.bf16.msra.mxu0 0
      %1093 = vmatpush.bf16.msra.mxu0 0
      %1094 = vmatpush.bf16.msra.mxu0 0
      %1095 = vmatpush.bf16.msra.mxu0 0
      %1096 = vmatpush.bf16.msra.mxu0 0
      %1097 = vmatpush.bf16.msra.mxu0 0
      %1098 = vmatpush.bf16.msra.mxu0 %v719
      %1099 = vmatmul.bf16.gmra.mxu0 %v829
      %v1100 = vpop.f32.mrf.mxu0
      %v1101 = vadd.f32 0.0, %v1100
      %v1102 = vpop.f32.mrf.mxu0
      %1103 = vdwg.mxu0
      %1104 = vmatpush.bf16.msra.mxu0 0
      %1105 = vmatpush.bf16.msra.mxu0 0
      %1106 = vmatpush.bf16.msra.mxu0 0
      %1107 = vmatpush.bf16.msra.mxu0 0
      %1108 = vmatpush.bf16.msra.mxu0 0
      %1109 = vmatpush.bf16.msra.mxu0 0
      %1110 = vmatpush.bf16.msra.mxu0 0
      %1111 = vmatpush.bf16.msra.mxu0 %v720
      %1112 = vmatmul.bf16.gmra.mxu0 %v829
      %v1113 = vpop.f32.mrf.mxu0
      %v1114 = vadd.f32 0.0, %v1113
      %v1115 = vpop.f32.mrf.mxu0
      %1116 = vdwg.mxu0
      %1117 = vmatpush.bf16.msra.mxu0 0
      %1118 = vmatpush.bf16.msra.mxu0 0
      %1119 = vmatpush.bf16.msra.mxu0 0
      %1120 = vmatpush.bf16.msra.mxu0 0
      %1121 = vmatpush.bf16.msra.mxu0 0
      %1122 = vmatpush.bf16.msra.mxu0 0
      %1123 = vmatpush.bf16.msra.mxu0 0
      %1124 = vmatpush.bf16.msra.mxu0 %v721
      %1125 = vmatmul.bf16.gmra.mxu0 %v829
      %v1126 = vpop.f32.mrf.mxu0
      %v1127 = vadd.f32 0.0, %v1126
      %v1128 = vpop.f32.mrf.mxu0
      %1129 = vdwg.mxu0
      %1130 = vmatpush.bf16.msra.mxu0 0
      %1131 = vmatpush.bf16.msra.mxu0 0
      %1132 = vmatpush.bf16.msra.mxu0 0
      %1133 = vmatpush.bf16.msra.mxu0 0
      %1134 = vmatpush.bf16.msra.mxu0 0
      %1135 = vmatpush.bf16.msra.mxu0 0
      %1136 = vmatpush.bf16.msra.mxu0 0
      %1137 = vmatpush.bf16.msra.mxu0 %v722
      %1138 = vmatmul.bf16.gmra.mxu0 %v829
      %v1139 = vpop.f32.mrf.mxu0
      %v1140 = vadd.f32 0.0, %v1139
      %v1141 = vpop.f32.mrf.mxu0
      %1142 = vdwg.mxu0
      %1143 = vmatpush.bf16.msra.mxu0 0
      %1144 = vmatpush.bf16.msra.mxu0 0
      %1145 = vmatpush.bf16.msra.mxu0 0
      %1146 = vmatpush.bf16.msra.mxu0 0
      %1147 = vmatpush.bf16.msra.mxu0 0
      %1148 = vmatpush.bf16.msra.mxu0 0
      %1149 = vmatpush.bf16.msra.mxu0 0
      %1150 = vmatpush.bf16.msra.mxu0 %v723
      %1151 = vmatmul.bf16.gmra.mxu0 %v829
      %v1152 = vpop.f32.mrf.mxu0
      %v1153 = vadd.f32 0.0, %v1152
      %v1154 = vpop.f32.mrf.mxu0
      %1155 = vdwg.mxu0
      %1156 = vmatpush.bf16.msra.mxu0 0
      %1157 = vmatpush.bf16.msra.mxu0 0
      %1158 = vmatpush.bf16.msra.mxu0 0
      %1159 = vmatpush.bf16.msra.mxu0 0
      %1160 = vmatpush.bf16.msra.mxu0 0
      %1161 = vmatpush.bf16.msra.mxu0 0
      %1162 = vmatpush.bf16.msra.mxu0 0
      %1163 = vmatpush.bf16.msra.mxu0 %v724
      %1164 = vmatmul.bf16.gmra.mxu0 %v829
      %v1165 = vpop.f32.mrf.mxu0
      %v1166 = vadd.f32 0.0, %v1165
      %v1167 = vpop.f32.mrf.mxu0
      %1168 = vdwg.mxu0
      %1169 = vmatpush.bf16.msra.mxu0 0
      %1170 = vmatpush.bf16.msra.mxu0 0
      %1171 = vmatpush.bf16.msra.mxu0 0
      %1172 = vmatpush.bf16.msra.mxu0 0
      %1173 = vmatpush.bf16.msra.mxu0 0
      %1174 = vmatpush.bf16.msra.mxu0 0
      %1175 = vmatpush.bf16.msra.mxu0 0
      %1176 = vmatpush.bf16.msra.mxu0 %v725
      %1177 = vmatmul.bf16.gmra.mxu0 %v829
      %v1178 = vpop.f32.mrf.mxu0
      %v1179 = vadd.f32 0.0, %v1178
      %v1180 = vpop.f32.mrf.mxu0
      %1181 = vdwg.mxu0
      %1182 = vmatpush.bf16.msra.mxu0 0
      %1183 = vmatpush.bf16.msra.mxu0 0
      %1184 = vmatpush.bf16.msra.mxu0 0
      %1185 = vmatpush.bf16.msra.mxu0 0
      %1186 = vmatpush.bf16.msra.mxu0 0
      %1187 = vmatpush.bf16.msra.mxu0 0
      %1188 = vmatpush.bf16.msra.mxu0 0
      %1189 = vmatpush.bf16.msra.mxu0 %v726
      %1190 = vmatmul.bf16.gmra.mxu0 %v829
      %v1191 = vpop.f32.mrf.mxu0
      %v1192 = vadd.f32 0.0, %v1191
      %v1193 = vpop.f32.mrf.mxu0
      %1194 = vdwg.mxu0
      %1195 = vmatpush.bf16.msra.mxu0 0
      %1196 = vmatpush.bf16.msra.mxu0 0
      %1197 = vmatpush.bf16.msra.mxu0 0
      %1198 = vmatpush.bf16.msra.mxu0 0
      %1199 = vmatpush.bf16.msra.mxu0 0
      %1200 = vmatpush.bf16.msra.mxu0 0
      %1201 = vmatpush.bf16.msra.mxu0 0
      %1202 = vmatpush.bf16.msra.mxu0 %v727
      %1203 = vmatmul.bf16.gmra.mxu0 %v829
      %v1204 = vpop.f32.mrf.mxu0
      %v1205 = vadd.f32 0.0, %v1204
      %v1206 = vpop.f32.mrf.mxu0
      %1207 = vdwg.mxu0
      %1208 = vmatpush.bf16.msra.mxu0 0
      %1209 = vmatpush.bf16.msra.mxu0 0
      %1210 = vmatpush.bf16.msra.mxu0 0
      %1211 = vmatpush.bf16.msra.mxu0 0
      %1212 = vmatpush.bf16.msra.mxu0 0
      %1213 = vmatpush.bf16.msra.mxu0 0
      %1214 = vmatpush.bf16.msra.mxu0 0
      %1215 = vmatpush.bf16.msra.mxu0 %v728
      %1216 = vmatmul.bf16.gmra.mxu0 %v829
      %v1217 = vpop.f32.mrf.mxu0
      %v1218 = vadd.f32 0.0, %v1217
      %v1219 = vpop.f32.mrf.mxu0
      %1220 = vdwg.mxu0
      %1221 = vmatpush.bf16.msra.mxu0 0
      %1222 = vmatpush.bf16.msra.mxu0 0
      %1223 = vmatpush.bf16.msra.mxu0 0
      %1224 = vmatpush.bf16.msra.mxu0 0
      %1225 = vmatpush.bf16.msra.mxu0 0
      %1226 = vmatpush.bf16.msra.mxu0 0
      %1227 = vmatpush.bf16.msra.mxu0 0
      %1228 = vmatpush.bf16.msra.mxu0 %v729
      %1229 = vmatmul.bf16.gmra.mxu0 %v829
      %v1230 = vpop.f32.mrf.mxu0
      %v1231 = vadd.f32 0.0, %v1230
      %v1232 = vpop.f32.mrf.mxu0
      %1233 = vdwg.mxu0
      %1234 = vmatpush.bf16.msra.mxu0 0
      %1235 = vmatpush.bf16.msra.mxu0 0
      %1236 = vmatpush.bf16.msra.mxu0 0
      %1237 = vmatpush.bf16.msra.mxu0 0
      %1238 = vmatpush.bf16.msra.mxu0 0
      %1239 = vmatpush.bf16.msra.mxu0 0
      %1240 = vmatpush.bf16.msra.mxu0 0
      %1241 = vmatpush.bf16.msra.mxu0 %v730
      %1242 = vmatmul.bf16.gmra.mxu0 %v829
      %v1243 = vpop.f32.mrf.mxu0
      %v1244 = vadd.f32 0.0, %v1243
      %v1245 = vpop.f32.mrf.mxu0
      %1246 = vdwg.mxu0
      %1247 = vmatpush.bf16.msra.mxu0 0
      %1248 = vmatpush.bf16.msra.mxu0 0
      %1249 = vmatpush.bf16.msra.mxu0 0
      %1250 = vmatpush.bf16.msra.mxu0 0
      %1251 = vmatpush.bf16.msra.mxu0 0
      %1252 = vmatpush.bf16.msra.mxu0 0
      %1253 = vmatpush.bf16.msra.mxu0 0
      %1254 = vmatpush.bf16.msra.mxu0 %v731
      %1255 = vmatmul.bf16.gmra.mxu0 %v829
      %v1256 = vpop.f32.mrf.mxu0
      %v1257 = vadd.f32 0.0, %v1256
      %v1258 = vpop.f32.mrf.mxu0
      %1259 = vdwg.mxu0
      %1260 = vmatpush.bf16.msra.mxu0 0
      %1261 = vmatpush.bf16.msra.mxu0 0
      %1262 = vmatpush.bf16.msra.mxu0 0
      %1263 = vmatpush.bf16.msra.mxu0 0
      %1264 = vmatpush.bf16.msra.mxu0 0
      %1265 = vmatpush.bf16.msra.mxu0 0
      %1266 = vmatpush.bf16.msra.mxu0 0
      %1267 = vmatpush.bf16.msra.mxu0 %v732
      %1268 = vmatmul.bf16.gmra.mxu0 %v829
      %v1269 = vpop.f32.mrf.mxu0
      %v1270 = vadd.f32 0.0, %v1269
      %v1271 = vpop.f32.mrf.mxu0
      %1272 = vdwg.mxu0
      %1273 = vmatpush.bf16.msra.mxu0 0
      %1274 = vmatpush.bf16.msra.mxu0 0
      %1275 = vmatpush.bf16.msra.mxu0 0
      %1276 = vmatpush.bf16.msra.mxu0 0
      %1277 = vmatpush.bf16.msra.mxu0 0
      %1278 = vmatpush.bf16.msra.mxu0 0
      %1279 = vmatpush.bf16.msra.mxu0 0
      %1280 = vmatpush.bf16.msra.mxu0 %v733
      %1281 = vmatmul.bf16.gmra.mxu0 %v829
      %v1282 = vpop.f32.mrf.mxu0
      %v1283 = vadd.f32 0.0, %v1282
      %v1284 = vpop.f32.mrf.mxu0
      %1285 = vdwg.mxu0
      %1286 = vmatpush.bf16.msra.mxu0 0
      %1287 = vmatpush.bf16.msra.mxu0 0
      %1288 = vmatpush.bf16.msra.mxu0 0
      %1289 = vmatpush.bf16.msra.mxu0 0
      %1290 = vmatpush.bf16.msra.mxu0 0
      %1291 = vmatpush.bf16.msra.mxu0 0
      %1292 = vmatpush.bf16.msra.mxu0 0
      %1293 = vmatpush.bf16.msra.mxu0 %v734
      %1294 = vmatmul.bf16.gmra.mxu0 %v829
      %v1295 = vpop.f32.mrf.mxu0
      %v1296 = vadd.f32 0.0, %v1295
      %v1297 = vpop.f32.mrf.mxu0
      %1298 = vdwg.mxu0
      %1299 = vmatpush.bf16.msra.mxu0 0
      %1300 = vmatpush.bf16.msra.mxu0 0
      %1301 = vmatpush.bf16.msra.mxu0 0
      %1302 = vmatpush.bf16.msra.mxu0 0
      %1303 = vmatpush.bf16.msra.mxu0 0
      %1304 = vmatpush.bf16.msra.mxu0 0
      %1305 = vmatpush.bf16.msra.mxu0 0
      %1306 = vmatpush.bf16.msra.mxu0 %v735
      %1307 = vmatmul.bf16.gmra.mxu0 %v829
      %v1308 = vpop.f32.mrf.mxu0
      %v1309 = vadd.f32 0.0, %v1308
      %v1310 = vpop.f32.mrf.mxu0
      %1311 = vdwg.mxu0
      %1312 = vmatpush.bf16.msra.mxu0 0
      %1313 = vmatpush.bf16.msra.mxu0 0
      %1314 = vmatpush.bf16.msra.mxu0 0
      %1315 = vmatpush.bf16.msra.mxu0 0
      %1316 = vmatpush.bf16.msra.mxu0 0
      %1317 = vmatpush.bf16.msra.mxu0 0
      %1318 = vmatpush.bf16.msra.mxu0 0
      %1319 = vmatpush.bf16.msra.mxu0 %v736
      %1320 = vmatmul.bf16.gmra.mxu0 %v829
      %v1321 = vpop.f32.mrf.mxu0
      %v1322 = vadd.f32 0.0, %v1321
      %v1323 = vpop.f32.mrf.mxu0
      %1324 = vdwg.mxu0
      %1325 = vmatpush.bf16.msra.mxu0 0
      %1326 = vmatpush.bf16.msra.mxu0 0
      %1327 = vmatpush.bf16.msra.mxu0 0
      %1328 = vmatpush.bf16.msra.mxu0 0
      %1329 = vmatpush.bf16.msra.mxu0 0
      %1330 = vmatpush.bf16.msra.mxu0 0
      %1331 = vmatpush.bf16.msra.mxu0 0
      %1332 = vmatpush.bf16.msra.mxu0 %v737
      %1333 = vmatmul.bf16.gmra.mxu0 %v829
      %v1334 = vpop.f32.mrf.mxu0
      %v1335 = vadd.f32 0.0, %v1334
      %v1336 = vpop.f32.mrf.mxu0
      %1337 = vdwg.mxu0
      %1338 = vmatpush.bf16.msra.mxu0 0
      %1339 = vmatpush.bf16.msra.mxu0 0
      %1340 = vmatpush.bf16.msra.mxu0 0
      %1341 = vmatpush.bf16.msra.mxu0 0
      %1342 = vmatpush.bf16.msra.mxu0 0
      %1343 = vmatpush.bf16.msra.mxu0 0
      %1344 = vmatpush.bf16.msra.mxu0 0
      %1345 = vmatpush.bf16.msra.mxu0 %v738
      %1346 = vmatmul.bf16.gmra.mxu0 %v829
      %v1347 = vpop.f32.mrf.mxu0
      %v1348 = vadd.f32 0.0, %v1347
      %v1349 = vpop.f32.mrf.mxu0
      %1350 = vdwg.mxu0
      %1351 = vmatpush.bf16.msra.mxu0 0
      %1352 = vmatpush.bf16.msra.mxu0 0
      %1353 = vmatpush.bf16.msra.mxu0 0
      %1354 = vmatpush.bf16.msra.mxu0 0
      %1355 = vmatpush.bf16.msra.mxu0 0
      %1356 = vmatpush.bf16.msra.mxu0 0
      %1357 = vmatpush.bf16.msra.mxu0 0
      %1358 = vmatpush.bf16.msra.mxu0 %v739
      %1359 = vmatmul.bf16.gmra.mxu0 %v829
      %v1360 = vpop.f32.mrf.mxu0
      %v1361 = vadd.f32 0.0, %v1360
      %v1362 = vpop.f32.mrf.mxu0
      %1363 = vdwg.mxu0
      %1364 = vmatpush.bf16.msra.mxu0 0
      %1365 = vmatpush.bf16.msra.mxu0 0
      %1366 = vmatpush.bf16.msra.mxu0 0
      %1367 = vmatpush.bf16.msra.mxu0 0
      %1368 = vmatpush.bf16.msra.mxu0 0
      %1369 = vmatpush.bf16.msra.mxu0 0
      %1370 = vmatpush.bf16.msra.mxu0 0
      %1371 = vmatpush.bf16.msra.mxu0 %v740
      %1372 = vmatmul.bf16.gmra.mxu0 %v829
      %v1373 = vpop.f32.mrf.mxu0
      %v1374 = vadd.f32 0.0, %v1373
      %v1375 = vpop.f32.mrf.mxu0
      %1376 = vdwg.mxu0
      %1377 = vmatpush.bf16.msra.mxu0 0
      %1378 = vmatpush.bf16.msra.mxu0 0
      %1379 = vmatpush.bf16.msra.mxu0 0
      %1380 = vmatpush.bf16.msra.mxu0 0
      %1381 = vmatpush.bf16.msra.mxu0 0
      %1382 = vmatpush.bf16.msra.mxu0 0
      %1383 = vmatpush.bf16.msra.mxu0 0
      %1384 = vmatpush.bf16.msra.mxu0 %v741
      %1385 = vmatmul.bf16.gmra.mxu0 %v829
      %v1386 = vpop.f32.mrf.mxu0
      %v1387 = vadd.f32 0.0, %v1386
      %v1388 = vpop.f32.mrf.mxu0
      %1389 = vdwg.mxu0
      %1390 = vmatpush.bf16.msra.mxu0 0
      %1391 = vmatpush.bf16.msra.mxu0 0
      %1392 = vmatpush.bf16.msra.mxu0 0
      %1393 = vmatpush.bf16.msra.mxu0 0
      %1394 = vmatpush.bf16.msra.mxu0 0
      %1395 = vmatpush.bf16.msra.mxu0 0
      %1396 = vmatpush.bf16.msra.mxu0 0
      %1397 = vmatpush.bf16.msra.mxu0 %v742
      %1398 = vmatmul.bf16.gmra.mxu0 %v829
      %v1399 = vpop.f32.mrf.mxu0
      %v1400 = vadd.f32 0.0, %v1399
      %v1401 = vpop.f32.mrf.mxu0
      %1402 = vdwg.mxu0
      %1403 = vmatpush.bf16.msra.mxu0 0
      %1404 = vmatpush.bf16.msra.mxu0 0
      %1405 = vmatpush.bf16.msra.mxu0 0
      %1406 = vmatpush.bf16.msra.mxu0 0
      %1407 = vmatpush.bf16.msra.mxu0 0
      %1408 = vmatpush.bf16.msra.mxu0 0
      %1409 = vmatpush.bf16.msra.mxu0 0
      %1410 = vmatpush.bf16.msra.mxu0 %v743
      %1411 = vmatmul.bf16.gmra.mxu0 %v829
      %v1412 = vpop.f32.mrf.mxu0
      %v1413 = vadd.f32 0.0, %v1412
      %v1414 = vpop.f32.mrf.mxu0
      %1415 = vdwg.mxu0
      %1416 = vmatpush.bf16.msra.mxu0 0
      %1417 = vmatpush.bf16.msra.mxu0 0
      %1418 = vmatpush.bf16.msra.mxu0 0
      %1419 = vmatpush.bf16.msra.mxu0 0
      %1420 = vmatpush.bf16.msra.mxu0 0
      %1421 = vmatpush.bf16.msra.mxu0 0
      %1422 = vmatpush.bf16.msra.mxu0 0
      %1423 = vmatpush.bf16.msra.mxu0 %v744
      %1424 = vmatmul.bf16.gmra.mxu0 %v829
      %v1425 = vpop.f32.mrf.mxu0
      %v1426 = vadd.f32 0.0, %v1425
      %v1427 = vpop.f32.mrf.mxu0
      %1428 = vdwg.mxu0
      %1429 = vmatpush.bf16.msra.mxu0 0
      %1430 = vmatpush.bf16.msra.mxu0 0
      %1431 = vmatpush.bf16.msra.mxu0 0
      %1432 = vmatpush.bf16.msra.mxu0 0
      %1433 = vmatpush.bf16.msra.mxu0 0
      %1434 = vmatpush.bf16.msra.mxu0 0
      %1435 = vmatpush.bf16.msra.mxu0 0
      %1436 = vmatpush.bf16.msra.mxu0 %v745
      %1437 = vmatmul.bf16.gmra.mxu0 %v829
      %v1438 = vpop.f32.mrf.mxu0
      %v1439 = vadd.f32 0.0, %v1438
      %v1440 = vpop.f32.mrf.mxu0
      %1441 = vdwg.mxu0
      %1442 = vmatpush.bf16.msra.mxu0 0
      %1443 = vmatpush.bf16.msra.mxu0 0
      %1444 = vmatpush.bf16.msra.mxu0 0
      %1445 = vmatpush.bf16.msra.mxu0 0
      %1446 = vmatpush.bf16.msra.mxu0 0
      %1447 = vmatpush.bf16.msra.mxu0 0
      %1448 = vmatpush.bf16.msra.mxu0 0
      %1449 = vmatpush.bf16.msra.mxu0 %v746
      %1450 = vmatmul.bf16.gmra.mxu0 %v829
      %v1451 = vpop.f32.mrf.mxu0
      %v1452 = vadd.f32 0.0, %v1451
      %v1453 = vpop.f32.mrf.mxu0
      %1454 = vdwg.mxu0
      %1455 = vmatpush.bf16.msra.mxu0 0
      %1456 = vmatpush.bf16.msra.mxu0 0
      %1457 = vmatpush.bf16.msra.mxu0 0
      %1458 = vmatpush.bf16.msra.mxu0 0
      %1459 = vmatpush.bf16.msra.mxu0 0
      %1460 = vmatpush.bf16.msra.mxu0 0
      %1461 = vmatpush.bf16.msra.mxu0 0
      %1462 = vmatpush.bf16.msra.mxu0 %v747
      %1463 = vmatmul.bf16.gmra.mxu0 %v829
      %v1464 = vpop.f32.mrf.mxu0
      %v1465 = vadd.f32 0.0, %v1464
      %v1466 = vpop.f32.mrf.mxu0
      %1467 = vdwg.mxu0
      %1468 = vmatpush.bf16.msra.mxu0 0
      %1469 = vmatpush.bf16.msra.mxu0 0
      %1470 = vmatpush.bf16.msra.mxu0 0
      %1471 = vmatpush.bf16.msra.mxu0 0
      %1472 = vmatpush.bf16.msra.mxu0 0
      %1473 = vmatpush.bf16.msra.mxu0 0
      %1474 = vmatpush.bf16.msra.mxu0 0
      %1475 = vmatpush.bf16.msra.mxu0 %v748
      %1476 = vmatmul.bf16.gmra.mxu0 %v829
      %v1477 = vpop.f32.mrf.mxu0
      %v1478 = vadd.f32 0.0, %v1477
      %v1479 = vpop.f32.mrf.mxu0
      %1480 = vdwg.mxu0
      %1481 = vmatpush.bf16.msra.mxu0 0
      %1482 = vmatpush.bf16.msra.mxu0 0
      %1483 = vmatpush.bf16.msra.mxu0 0
      %1484 = vmatpush.bf16.msra.mxu0 0
      %1485 = vmatpush.bf16.msra.mxu0 0
      %1486 = vmatpush.bf16.msra.mxu0 0
      %1487 = vmatpush.bf16.msra.mxu0 0
      %1488 = vmatpush.bf16.msra.mxu0 %v749
      %1489 = vmatmul.bf16.gmra.mxu0 %v829
      %v1490 = vpop.f32.mrf.mxu0
      %v1491 = vadd.f32 0.0, %v1490
      %v1492 = vpop.f32.mrf.mxu0
      %1493 = vdwg.mxu0
      %1494 = vmatpush.bf16.msra.mxu0 0
      %1495 = vmatpush.bf16.msra.mxu0 0
      %1496 = vmatpush.bf16.msra.mxu0 0
      %1497 = vmatpush.bf16.msra.mxu0 0
      %1498 = vmatpush.bf16.msra.mxu0 0
      %1499 = vmatpush.bf16.msra.mxu0 0
      %1500 = vmatpush.bf16.msra.mxu0 0
      %1501 = vmatpush.bf16.msra.mxu0 %v750
      %1502 = vmatmul.bf16.gmra.mxu0 %v829
      %v1503 = vpop.f32.mrf.mxu0
      %v1504 = vadd.f32 0.0, %v1503
      %v1505 = vpop.f32.mrf.mxu0
      %1506 = vdwg.mxu0
      %1507 = vmatpush.bf16.msra.mxu0 0
      %1508 = vmatpush.bf16.msra.mxu0 0
      %1509 = vmatpush.bf16.msra.mxu0 0
      %1510 = vmatpush.bf16.msra.mxu0 0
      %1511 = vmatpush.bf16.msra.mxu0 0
      %1512 = vmatpush.bf16.msra.mxu0 0
      %1513 = vmatpush.bf16.msra.mxu0 0
      %1514 = vmatpush.bf16.msra.mxu0 %v751
      %1515 = vmatmul.bf16.gmra.mxu0 %v829
      %v1516 = vpop.f32.mrf.mxu0
      %v1517 = vadd.f32 0.0, %v1516
      %v1518 = vpop.f32.mrf.mxu0
      %1519 = vdwg.mxu0
      %1520 = vmatpush.bf16.msra.mxu0 0
      %1521 = vmatpush.bf16.msra.mxu0 0
      %1522 = vmatpush.bf16.msra.mxu0 0
      %1523 = vmatpush.bf16.msra.mxu0 0
      %1524 = vmatpush.bf16.msra.mxu0 0
      %1525 = vmatpush.bf16.msra.mxu0 0
      %1526 = vmatpush.bf16.msra.mxu0 0
      %1527 = vmatpush.bf16.msra.mxu0 %v752
      %1528 = vmatmul.bf16.gmra.mxu0 %v829
      %v1529 = vpop.f32.mrf.mxu0
      %v1530 = vadd.f32 0.0, %v1529
      %v1531 = vpop.f32.mrf.mxu0
      %1532 = vdwg.mxu0
      %1533 = vmatpush.bf16.msra.mxu0 0
      %1534 = vmatpush.bf16.msra.mxu0 0
      %1535 = vmatpush.bf16.msra.mxu0 0
      %1536 = vmatpush.bf16.msra.mxu0 0
      %1537 = vmatpush.bf16.msra.mxu0 0
      %1538 = vmatpush.bf16.msra.mxu0 0
      %1539 = vmatpush.bf16.msra.mxu0 0
      %1540 = vmatpush.bf16.msra.mxu0 %v753
      %1541 = vmatmul.bf16.gmra.mxu0 %v829
      %v1542 = vpop.f32.mrf.mxu0
      %v1543 = vadd.f32 0.0, %v1542
      %v1544 = vpop.f32.mrf.mxu0
      %1545 = vdwg.mxu0
      %1546 = vmatpush.bf16.msra.mxu0 0
      %1547 = vmatpush.bf16.msra.mxu0 0
      %1548 = vmatpush.bf16.msra.mxu0 0
      %1549 = vmatpush.bf16.msra.mxu0 0
      %1550 = vmatpush.bf16.msra.mxu0 0
      %1551 = vmatpush.bf16.msra.mxu0 0
      %1552 = vmatpush.bf16.msra.mxu0 0
      %1553 = vmatpush.bf16.msra.mxu0 %v754
      %1554 = vmatmul.bf16.gmra.mxu0 %v829
      %v1555 = vpop.f32.mrf.mxu0
      %v1556 = vadd.f32 0.0, %v1555
      %v1557 = vpop.f32.mrf.mxu0
      %1558 = vdwg.mxu0
      %1559 = vmatpush.bf16.msra.mxu0 0
      %1560 = vmatpush.bf16.msra.mxu0 0
      %1561 = vmatpush.bf16.msra.mxu0 0
      %1562 = vmatpush.bf16.msra.mxu0 0
      %1563 = vmatpush.bf16.msra.mxu0 0
      %1564 = vmatpush.bf16.msra.mxu0 0
      %1565 = vmatpush.bf16.msra.mxu0 0
      %1566 = vmatpush.bf16.msra.mxu0 %v755
      %1567 = vmatmul.bf16.gmra.mxu0 %v829
      %v1568 = vpop.f32.mrf.mxu0
      %v1569 = vadd.f32 0.0, %v1568
      %v1570 = vpop.f32.mrf.mxu0
      %1571 = vdwg.mxu0
      %1572 = vmatpush.bf16.msra.mxu0 0
      %1573 = vmatpush.bf16.msra.mxu0 0
      %1574 = vmatpush.bf16.msra.mxu0 0
      %1575 = vmatpush.bf16.msra.mxu0 0
      %1576 = vmatpush.bf16.msra.mxu0 0
      %1577 = vmatpush.bf16.msra.mxu0 0
      %1578 = vmatpush.bf16.msra.mxu0 0
      %1579 = vmatpush.bf16.msra.mxu0 %v756
      %1580 = vmatmul.bf16.gmra.mxu0 %v829
      %v1581 = vpop.f32.mrf.mxu0
      %v1582 = vadd.f32 0.0, %v1581
      %v1583 = vpop.f32.mrf.mxu0
      %1584 = vdwg.mxu0
      %1585 = vmatpush.bf16.msra.mxu0 0
      %1586 = vmatpush.bf16.msra.mxu0 0
      %1587 = vmatpush.bf16.msra.mxu0 0
      %1588 = vmatpush.bf16.msra.mxu0 0
      %1589 = vmatpush.bf16.msra.mxu0 0
      %1590 = vmatpush.bf16.msra.mxu0 0
      %1591 = vmatpush.bf16.msra.mxu0 0
      %1592 = vmatpush.bf16.msra.mxu0 %v757
      %1593 = vmatmul.bf16.gmra.mxu0 %v829
      %v1594 = vpop.f32.mrf.mxu0
      %v1595 = vadd.f32 0.0, %v1594
      %v1596 = vpop.f32.mrf.mxu0
      %1597 = vdwg.mxu0
      %1598 = vmatpush.bf16.msra.mxu0 0
      %1599 = vmatpush.bf16.msra.mxu0 0
      %1600 = vmatpush.bf16.msra.mxu0 0
      %1601 = vmatpush.bf16.msra.mxu0 0
      %1602 = vmatpush.bf16.msra.mxu0 0
      %1603 = vmatpush.bf16.msra.mxu0 0
      %1604 = vmatpush.bf16.msra.mxu0 0
      %1605 = vmatpush.bf16.msra.mxu0 %v758
      %1606 = vmatmul.bf16.gmra.mxu0 %v829
      %v1607 = vpop.f32.mrf.mxu0
      %v1608 = vadd.f32 0.0, %v1607
      %v1609 = vpop.f32.mrf.mxu0
      %1610 = vdwg.mxu0
      %1611 = vmatpush.bf16.msra.mxu0 0
      %1612 = vmatpush.bf16.msra.mxu0 0
      %1613 = vmatpush.bf16.msra.mxu0 0
      %1614 = vmatpush.bf16.msra.mxu0 0
      %1615 = vmatpush.bf16.msra.mxu0 0
      %1616 = vmatpush.bf16.msra.mxu0 0
      %1617 = vmatpush.bf16.msra.mxu0 0
      %1618 = vmatpush.bf16.msra.mxu0 %v759
      %1619 = vmatmul.bf16.gmra.mxu0 %v829
      %v1620 = vpop.f32.mrf.mxu0
      %v1621 = vadd.f32 0.0, %v1620
      %v1622 = vpop.f32.mrf.mxu0
      %1623 = vdwg.mxu0
      %1624 = vmatpush.bf16.msra.mxu0 0
      %1625 = vmatpush.bf16.msra.mxu0 0
      %1626 = vmatpush.bf16.msra.mxu0 0
      %1627 = vmatpush.bf16.msra.mxu0 0
      %1628 = vmatpush.bf16.msra.mxu0 0
      %1629 = vmatpush.bf16.msra.mxu0 0
      %1630 = vmatpush.bf16.msra.mxu0 0
      %1631 = vmatpush.bf16.msra.mxu0 %v760
      %1632 = vmatmul.bf16.gmra.mxu0 %v829
      %v1633 = vpop.f32.mrf.mxu0
      %v1634 = vadd.f32 0.0, %v1633
      %v1635 = vpop.f32.mrf.mxu0
      %1636 = vdwg.mxu0
      %1637 = vmatpush.bf16.msra.mxu0 0
      %1638 = vmatpush.bf16.msra.mxu0 0
      %1639 = vmatpush.bf16.msra.mxu0 0
      %1640 = vmatpush.bf16.msra.mxu0 0
      %1641 = vmatpush.bf16.msra.mxu0 0
      %1642 = vmatpush.bf16.msra.mxu0 0
      %1643 = vmatpush.bf16.msra.mxu0 0
      %1644 = vmatpush.bf16.msra.mxu0 %v761
      %1645 = vmatmul.bf16.gmra.mxu0 %v829
      %v1646 = vpop.f32.mrf.mxu0
      %v1647 = vadd.f32 0.0, %v1646
      %v1648 = vpop.f32.mrf.mxu0
      %1649 = vdwg.mxu0
      %1650 = vmatpush.bf16.msra.mxu0 0
      %1651 = vmatpush.bf16.msra.mxu0 0
      %1652 = vmatpush.bf16.msra.mxu0 0
      %1653 = vmatpush.bf16.msra.mxu0 0
      %1654 = vmatpush.bf16.msra.mxu0 0
      %1655 = vmatpush.bf16.msra.mxu0 0
      %1656 = vmatpush.bf16.msra.mxu0 0
      %1657 = vmatpush.bf16.msra.mxu0 %v762
      %1658 = vmatmul.bf16.gmra.mxu0 %v829
      %v1659 = vpop.f32.mrf.mxu0
      %v1660 = vadd.f32 0.0, %v1659
      %v1661 = vpop.f32.mrf.mxu0
      %1662 = vdwg.mxu0
      %v1727 = vrot.slane %v854, 7
      %v1728 = vrot.slane %v867, 6
      %v1729 = vrot.slane %v880, 5
      %v1730 = vrot.slane %v893, 4
      %v1731 = vrot.slane %v906, 3
      %v1732 = vrot.slane %v919, 2
      %v1733 = vrot.slane %v932, 1
      %v1734 = vrot.slane %v958, 7
      %v1735 = vrot.slane %v971, 6
      %v1736 = vrot.slane %v984, 5
      %v1737 = vrot.slane %v997, 4
      %v1738 = vrot.slane %v1010, 3
      %v1739 = vrot.slane %v1023, 2
      %v1740 = vrot.slane %v1036, 1
      %v1741 = vrot.slane %v1062, 7
      %v1742 = vrot.slane %v1075, 6
      %v1743 = vrot.slane %v1088, 5
      %v1744 = vrot.slane %v1101, 4
      %v1745 = vrot.slane %v1114, 3
      %v1746 = vrot.slane %v1127, 2
      %v1747 = vrot.slane %v1140, 1
      %v1748 = vrot.slane %v1166, 7
      %v1749 = vrot.slane %v1179, 6
      %v1750 = vrot.slane %v1192, 5
      %v1751 = vrot.slane %v1205, 4
      %v1752 = vrot.slane %v1218, 3
      %v1753 = vrot.slane %v1231, 2
      %v1754 = vrot.slane %v1244, 1
      %v1755 = vrot.slane %v1270, 7
      %v1756 = vrot.slane %v1283, 6
      %v1757 = vrot.slane %v1296, 5
      %v1758 = vrot.slane %v1309, 4
      %v1759 = vrot.slane %v1322, 3
      %v1760 = vrot.slane %v1335, 2
      %v1761 = vrot.slane %v1348, 1
      %v1762 = vrot.slane %v1374, 7
      %v1763 = vrot.slane %v1387, 6
      %v1764 = vrot.slane %v1400, 5
      %v1765 = vrot.slane %v1413, 4
      %v1766 = vrot.slane %v1426, 3
      %v1767 = vrot.slane %v1439, 2
      %v1768 = vrot.slane %v1452, 1
      %v1769 = vrot.slane %v1478, 7
      %v1770 = vrot.slane %v1491, 6
      %v1771 = vrot.slane %v1504, 5
      %v1772 = vrot.slane %v1517, 4
      %v1773 = vrot.slane %v1530, 3
      %v1774 = vrot.slane %v1543, 2
      %v1775 = vrot.slane %v1556, 1
      %v1776 = vrot.slane %v1582, 7
      %v1777 = vrot.slane %v1595, 6
      %v1778 = vrot.slane %v1608, 5
      %v1779 = vrot.slane %v1621, 4
      %v1780 = vrot.slane %v1634, 3
      %v1781 = vrot.slane %v1647, 2
      %v1782 = vrot.slane %v1660, 1
      %vm1783 = vcmask 1040384
      %v1784 = vsel %vm1783, %v841, %v1727
      %vm1785 = vcmask 1042434
      %v1786 = vsel %vm1785, %v1728, %v1729
      %vm1787 = vcmask 1041408
      %v1788 = vsel %vm1787, %v1784, %v1786
      %vm1789 = vcmask 1044484
      %v1790 = vsel %vm1789, %v1730, %v1731
      %vm1791 = vcmask 1046534
      %v1792 = vsel %vm1791, %v1732, %v1733
      %vm1793 = vcmask 1045508
      %v1794 = vsel %vm1793, %v1790, %v1792
      %vm1795 = vcmask 1043456
      %v1796 = vsel %vm1795, %v1788, %v1794
      %v1797 = vsel %vm1783, %v945, %v1734
      %v1798 = vsel %vm1785, %v1735, %v1736
      %v1799 = vsel %vm1787, %v1797, %v1798
      %v1800 = vsel %vm1789, %v1737, %v1738
      %v1801 = vsel %vm1791, %v1739, %v1740
      %v1802 = vsel %vm1793, %v1800, %v1801
      %v1803 = vsel %vm1795, %v1799, %v1802
      %v1804 = vsel %vm1783, %v1049, %v1741
      %v1805 = vsel %vm1785, %v1742, %v1743
      %v1806 = vsel %vm1787, %v1804, %v1805
      %v1807 = vsel %vm1789, %v1744, %v1745
      %v1808 = vsel %vm1791, %v1746, %v1747
      %v1809 = vsel %vm1793, %v1807, %v1808
      %v1810 = vsel %vm1795, %v1806, %v1809
      %v1811 = vsel %vm1783, %v1153, %v1748
      %v1812 = vsel %vm1785, %v1749, %v1750
      %v1813 = vsel %vm1787, %v1811, %v1812
      %v1814 = vsel %vm1789, %v1751, %v1752
      %v1815 = vsel %vm1791, %v1753, %v1754
      %v1816 = vsel %vm1793, %v1814, %v1815
      %v1817 = vsel %vm1795, %v1813, %v1816
      %v1818 = vsel %vm1783, %v1257, %v1755
      %v1819 = vsel %vm1785, %v1756, %v1757
      %v1820 = vsel %vm1787, %v1818, %v1819
      %v1821 = vsel %vm1789, %v1758, %v1759
      %v1822 = vsel %vm1791, %v1760, %v1761
      %v1823 = vsel %vm1793, %v1821, %v1822
      %v1824 = vsel %vm1795, %v1820, %v1823
      %v1825 = vsel %vm1783, %v1361, %v1762
      %v1826 = vsel %vm1785, %v1763, %v1764
      %v1827 = vsel %vm1787, %v1825, %v1826
      %v1828 = vsel %vm1789, %v1765, %v1766
      %v1829 = vsel %vm1791, %v1767, %v1768
      %v1830 = vsel %vm1793, %v1828, %v1829
      %v1831 = vsel %vm1795, %v1827, %v1830
      %v1832 = vsel %vm1783, %v1465, %v1769
      %v1833 = vsel %vm1785, %v1770, %v1771
      %v1834 = vsel %vm1787, %v1832, %v1833
      %v1835 = vsel %vm1789, %v1772, %v1773
      %v1836 = vsel %vm1791, %v1774, %v1775
      %v1837 = vsel %vm1793, %v1835, %v1836
      %v1838 = vsel %vm1795, %v1834, %v1837
      %v1839 = vsel %vm1783, %v1569, %v1776
      %v1840 = vsel %vm1785, %v1777, %v1778
      %v1841 = vsel %vm1787, %v1839, %v1840
      %v1842 = vsel %vm1789, %v1779, %v1780
      %v1843 = vsel %vm1791, %v1781, %v1782
      %v1844 = vsel %vm1793, %v1842, %v1843
      %v1845 = vsel %vm1795, %v1841, %v1844
      %vm1846 = vcmask 1041409
      %v1847 = vsel %vm1846, %v841, %v1727
      %vm1848 = vcmask 1043459
      %v1849 = vsel %vm1848, %v1728, %v1729
      %vm1850 = vcmask 1042433
      %v1851 = vsel %vm1850, %v1847, %v1849
      %vm1852 = vcmask 1045509
      %v1853 = vsel %vm1852, %v1730, %v1731
      %vm1854 = vcmask 1046528
      %v1855 = vsel %vm1854, %v1733, %v1732
      %vm1856 = vcmask 1046533
      %v1857 = vsel %vm1856, %v1853, %v1855
      %vm1858 = vcmask 1044481
      %v1859 = vsel %vm1858, %v1851, %v1857
      %v1860 = vrot.slane %v1859, 1
      %v1861 = vsel %vm1846, %v945, %v1734
      %v1862 = vsel %vm1848, %v1735, %v1736
      %v1863 = vsel %vm1850, %v1861, %v1862
      %v1864 = vsel %vm1852, %v1737, %v1738
      %v1865 = vsel %vm1854, %v1740, %v1739
      %v1866 = vsel %vm1856, %v1864, %v1865
      %v1867 = vsel %vm1858, %v1863, %v1866
      %v1868 = vrot.slane %v1867, 1
      %v1869 = vsel %vm1846, %v1049, %v1741
      %v1870 = vsel %vm1848, %v1742, %v1743
      %v1871 = vsel %vm1850, %v1869, %v1870
      %v1872 = vsel %vm1852, %v1744, %v1745
      %v1873 = vsel %vm1854, %v1747, %v1746
      %v1874 = vsel %vm1856, %v1872, %v1873
      %v1875 = vsel %vm1858, %v1871, %v1874
      %v1876 = vrot.slane %v1875, 1
      %v1877 = vsel %vm1846, %v1153, %v1748
      %v1878 = vsel %vm1848, %v1749, %v1750
      %v1879 = vsel %vm1850, %v1877, %v1878
      %v1880 = vsel %vm1852, %v1751, %v1752
      %v1881 = vsel %vm1854, %v1754, %v1753
      %v1882 = vsel %vm1856, %v1880, %v1881
      %v1883 = vsel %vm1858, %v1879, %v1882
      %v1884 = vrot.slane %v1883, 1
      %v1885 = vsel %vm1846, %v1257, %v1755
      %v1886 = vsel %vm1848, %v1756, %v1757
      %v1887 = vsel %vm1850, %v1885, %v1886
      %v1888 = vsel %vm1852, %v1758, %v1759
      %v1889 = vsel %vm1854, %v1761, %v1760
      %v1890 = vsel %vm1856, %v1888, %v1889
      %v1891 = vsel %vm1858, %v1887, %v1890
      %v1892 = vrot.slane %v1891, 1
      %v1893 = vsel %vm1846, %v1361, %v1762
      %v1894 = vsel %vm1848, %v1763, %v1764
      %v1895 = vsel %vm1850, %v1893, %v1894
      %v1896 = vsel %vm1852, %v1765, %v1766
      %v1897 = vsel %vm1854, %v1768, %v1767
      %v1898 = vsel %vm1856, %v1896, %v1897
      %v1899 = vsel %vm1858, %v1895, %v1898
      %v1900 = vrot.slane %v1899, 1
      %v1901 = vsel %vm1846, %v1465, %v1769
      %v1902 = vsel %vm1848, %v1770, %v1771
      %v1903 = vsel %vm1850, %v1901, %v1902
      %v1904 = vsel %vm1852, %v1772, %v1773
      %v1905 = vsel %vm1854, %v1775, %v1774
      %v1906 = vsel %vm1856, %v1904, %v1905
      %v1907 = vsel %vm1858, %v1903, %v1906
      %v1908 = vrot.slane %v1907, 1
      %v1909 = vsel %vm1846, %v1569, %v1776
      %v1910 = vsel %vm1848, %v1777, %v1778
      %v1911 = vsel %vm1850, %v1909, %v1910
      %v1912 = vsel %vm1852, %v1779, %v1780
      %v1913 = vsel %vm1854, %v1782, %v1781
      %v1914 = vsel %vm1856, %v1912, %v1913
      %v1915 = vsel %vm1858, %v1911, %v1914
      %v1916 = vrot.slane %v1915, 1
      %v1934 = vunpack.c.l.s4 1966171168
      %v1935 = vunpack.c.0.s8 %v1934
      %v1936 = vperm.slane %v1796, %v1935
      %v1938 = vunpack.c.l.s4 1966171168
      %v1939 = vunpack.c.0.s8 %v1938
      %v1940 = vperm.slane %v1803, %v1939
      %v1942 = vunpack.c.l.s4 1966171168
      %v1943 = vunpack.c.0.s8 %v1942
      %v1944 = vperm.slane %v1810, %v1943
      %v1946 = vunpack.c.l.s4 1966171168
      %v1947 = vunpack.c.0.s8 %v1946
      %v1948 = vperm.slane %v1817, %v1947
      %v1950 = vunpack.c.l.s4 1966171168
      %v1951 = vunpack.c.0.s8 %v1950
      %v1952 = vperm.slane %v1824, %v1951
      %v1954 = vunpack.c.l.s4 1966171168
      %v1955 = vunpack.c.0.s8 %v1954
      %v1956 = vperm.slane %v1831, %v1955
      %v1958 = vunpack.c.l.s4 1966171168
      %v1959 = vunpack.c.0.s8 %v1958
      %v1960 = vperm.slane %v1838, %v1959
      %v1962 = vunpack.c.l.s4 1966171168
      %v1963 = vunpack.c.0.s8 %v1962
      %v1964 = vperm.slane %v1845, %v1963
      %v1966 = vunpack.c.l.s4 1966171168
      %v1967 = vunpack.c.0.s8 %v1966
      %v1968 = vperm.slane %v1860, %v1967
      %v1970 = vunpack.c.l.s4 1966171168
      %v1971 = vunpack.c.0.s8 %v1970
      %v1972 = vperm.slane %v1868, %v1971
      %v1974 = vunpack.c.l.s4 1966171168
      %v1975 = vunpack.c.0.s8 %v1974
      %v1976 = vperm.slane %v1876, %v1975
      %v1978 = vunpack.c.l.s4 1966171168
      %v1979 = vunpack.c.0.s8 %v1978
      %v1980 = vperm.slane %v1884, %v1979
      %v1982 = vunpack.c.l.s4 1966171168
      %v1983 = vunpack.c.0.s8 %v1982
      %v1984 = vperm.slane %v1892, %v1983
      %v1986 = vunpack.c.l.s4 1966171168
      %v1987 = vunpack.c.0.s8 %v1986
      %v1988 = vperm.slane %v1900, %v1987
      %v1990 = vunpack.c.l.s4 1966171168
      %v1991 = vunpack.c.0.s8 %v1990
      %v1992 = vperm.slane %v1908, %v1991
      %v1994 = vunpack.c.l.s4 1966171168
      %v1995 = vunpack.c.0.s8 %v1994
      %v1996 = vperm.slane %v1916, %v1995
      %v1997 = vadd.f32 %v1968, %v1952
      %v1998 = vadd.f32 %v1972, %v1956
      %v1999 = vadd.f32 %v1976, %v1960
      %v2000 = vadd.f32 %v1980, %v1964
      %v2005 = vrot.slane %v1968, 4
      %v2006 = vrot.slane %v1972, 4
      %v2007 = vrot.slane %v1976, 4
      %v2008 = vrot.slane %v1980, 4
      %v2017 = vrot.slane %v1952, 4
      %v2018 = vrot.slane %v1956, 4
      %v2019 = vrot.slane %v1960, 4
      %v2020 = vrot.slane %v1964, 4
      %v2025 = vadd.f32 %v2005, %v2017
      %v2026 = vadd.f32 %v2006, %v2018
      %v2027 = vadd.f32 %v2007, %v2019
      %v2028 = vadd.f32 %v2008, %v2020
      %2033 = vst [vmem:[#allocation1] ss:$2 sm:$0xff] %v1936
      %s2034 = scalar_lea.vmem [#allocation1], 1
      %2035 = vst [vmem:[%s2034] ss:$2 sm:$0xff] %v1940
      %s2036 = scalar_lea.vmem [#allocation1], 16
      %2037 = vst [vmem:[%s2036] ss:$2 sm:$0xff] %v1944
      %s2038 = scalar_lea.vmem [#allocation1], 17
      %2039 = vst [vmem:[%s2038] ss:$2 sm:$0xff] %v1948
      %v2040 = vld.sshfl [vmem:[#allocation1 + $0x8] sm:$0xff pattern:$0x75316420]
      %v2041 = vld.sshfl [vmem:[#allocation1 + $0x18] sm:$0xff pattern:$0x75316420]
      %2048 = vst [vmem:[#allocation1] ss:$2 sm:$0xff] %v1997
      %s2049 = scalar_lea.vmem [#allocation1], 1
      %2050 = vst [vmem:[%s2049] ss:$2 sm:$0xff] %v1998
      %s2051 = scalar_lea.vmem [#allocation1], 16
      %2052 = vst [vmem:[%s2051] ss:$2 sm:$0xff] %v1999
      %s2053 = scalar_lea.vmem [#allocation1], 17
      %2054 = vst [vmem:[%s2053] ss:$2 sm:$0xff] %v2000
      %v2055 = vld.sshfl [vmem:[#allocation1] sm:$0xff pattern:$0x75316420]
      %v2056 = vld.sshfl [vmem:[#allocation1 + $0x10] sm:$0xff pattern:$0x75316420]
      %2063 = vst [vmem:[#allocation1] ss:$2 sm:$0xff] %v2025
      %s2064 = scalar_lea.vmem [#allocation1], 1
      %2065 = vst [vmem:[%s2064] ss:$2 sm:$0xff] %v2026
      %s2066 = scalar_lea.vmem [#allocation1], 16
      %2067 = vst [vmem:[%s2066] ss:$2 sm:$0xff] %v2027
      %s2068 = scalar_lea.vmem [#allocation1], 17
      %2069 = vst [vmem:[%s2068] ss:$2 sm:$0xff] %v2028
      %v2070 = vld.sshfl [vmem:[#allocation1] sm:$0xff pattern:$0x75316420]
      %v2071 = vld.sshfl [vmem:[#allocation1 + $0x10] sm:$0xff pattern:$0x75316420]
      %2078 = vst [vmem:[#allocation1] ss:$2 sm:$0xff] %v1984
      %s2079 = scalar_lea.vmem [#allocation1], 1
      %2080 = vst [vmem:[%s2079] ss:$2 sm:$0xff] %v1988
      %s2081 = scalar_lea.vmem [#allocation1], 16
      %2082 = vst [vmem:[%s2081] ss:$2 sm:$0xff] %v1992
      %s2083 = scalar_lea.vmem [#allocation1], 17
      %2084 = vst [vmem:[%s2083] ss:$2 sm:$0xff] %v1996
      %v2085 = vld.sshfl [vmem:[#allocation1] sm:$0xff pattern:$0x75316420]
      %v2086 = vld.sshfl [vmem:[#allocation1 + $0x10] sm:$0xff pattern:$0x75316420]
      %v2089 = vld [vmem:[%s3] sm:$0xf]
      %v2091 = vperm.slane %v2089, 0
      %v2092 = vperm.slane %v2089, 1
      %v2093 = vperm.slane %v2089, 2
      %v2094 = vperm.slane %v2089, 3
      %v2099 = vadd.f32 %v2040, %v2091
      %v2100 = vadd.f32 %v2055, %v2092
      %v2101 = vadd.f32 %v2070, %v2093
      %v2102 = vadd.f32 %v2085, %v2094
      %v2103 = vadd.f32 %v2041, %v2091
      %v2104 = vadd.f32 %v2056, %v2092
      %v2105 = vadd.f32 %v2071, %v2093
      %v2106 = vadd.f32 %v2086, %v2094
      %v2107 = vmax.f32 %v2099, 0.0
      %v2108 = vmax.f32 %v2100, 0.0
      %v2109 = vmax.f32 %v2101, 0.0
      %v2110 = vmax.f32 %v2102, 0.0
      %v2111 = vmax.f32 %v2103, 0.0
      %v2112 = vmax.f32 %v2104, 0.0
      %v2113 = vmax.f32 %v2105, 0.0
      %v2114 = vmax.f32 %v2106, 0.0
      %2115 = vst [vmem:[%s399] sm:$0xff] %v2107
      %2116 = vst [vmem:[%s399 + $0x8] sm:$0xff] %v2108
      %2117 = vst [vmem:[%s399 + $0x10] sm:$0xff] %v2109
      %2118 = vst [vmem:[%s399 + $0x18] sm:$0xff] %v2110
      %2119 = vst [vmem:[%s399 + $0x20] sm:$0xff] %v2111
      %2120 = vst [vmem:[%s399 + $0x28] sm:$0xff] %v2112
      %2121 = vst [vmem:[%s399 + $0x30] sm:$0xff] %v2113
      %2122 = vst [vmem:[%s399 + $0x38] sm:$0xff] %v2114
      %v2123 = vadd.f32 %v2107, %v2111
      %v2124 = vrot.slane %v2123, 4
      %v2125 = vadd.f32 %v2123, %v2124
      %v2126 = vrot.slane %v2125, 2
      %v2127 = vadd.f32 %v2125, %v2126
      %v2128 = vrot.slane %v2127, 1
      %v2129 = vadd.f32 %v2127, %v2128
      %v2130 = vadd.f32 %v2108, %v2112
      %v2131 = vrot.slane %v2130, 4
      %v2132 = vadd.f32 %v2130, %v2131
      %v2133 = vrot.slane %v2132, 2
      %v2134 = vadd.f32 %v2132, %v2133
      %v2135 = vrot.slane %v2134, 1
      %v2136 = vadd.f32 %v2134, %v2135
      %v2137 = vadd.f32 %v2109, %v2113
      %v2138 = vrot.slane %v2137, 4
      %v2139 = vadd.f32 %v2137, %v2138
      %v2140 = vrot.slane %v2139, 2
      %v2141 = vadd.f32 %v2139, %v2140
      %v2142 = vrot.slane %v2141, 1
      %v2143 = vadd.f32 %v2141, %v2142
      %v2144 = vadd.f32 %v2110, %v2114
      %v2145 = vrot.slane %v2144, 4
      %v2146 = vadd.f32 %v2144, %v2145
      %v2147 = vrot.slane %v2146, 2
      %v2148 = vadd.f32 %v2146, %v2147
      %v2149 = vrot.slane %v2148, 1
      %v2150 = vadd.f32 %v2148, %v2149
      %v2151 = vmul.f32 %v2107, %v2107
      %v2152 = vmul.f32 %v2108, %v2108
      %v2153 = vmul.f32 %v2109, %v2109
      %v2154 = vmul.f32 %v2110, %v2110
      %v2155 = vmul.f32 %v2111, %v2111
      %v2156 = vmul.f32 %v2112, %v2112
      %v2157 = vmul.f32 %v2113, %v2113
      %v2158 = vmul.f32 %v2114, %v2114
      %v2159 = vadd.f32 %v2151, %v2155
      %v2160 = vrot.slane %v2159, 4
      %v2161 = vadd.f32 %v2159, %v2160
      %v2162 = vrot.slane %v2161, 2
      %v2163 = vadd.f32 %v2161, %v2162
      %v2164 = vrot.slane %v2163, 1
      %v2165 = vadd.f32 %v2163, %v2164
      %v2166 = vadd.f32 %v2152, %v2156
      %v2167 = vrot.slane %v2166, 4
      %v2168 = vadd.f32 %v2166, %v2167
      %v2169 = vrot.slane %v2168, 2
      %v2170 = vadd.f32 %v2168, %v2169
      %v2171 = vrot.slane %v2170, 1
      %v2172 = vadd.f32 %v2170, %v2171
      %v2173 = vadd.f32 %v2153, %v2157
      %v2174 = vrot.slane %v2173, 4
      %v2175 = vadd.f32 %v2173, %v2174
      %v2176 = vrot.slane %v2175, 2
      %v2177 = vadd.f32 %v2175, %v2176
      %v2178 = vrot.slane %v2177, 1
      %v2179 = vadd.f32 %v2177, %v2178
      %v2180 = vadd.f32 %v2154, %v2158
      %v2181 = vrot.slane %v2180, 4
      %v2182 = vadd.f32 %v2180, %v2181
      %v2183 = vrot.slane %v2182, 2
      %v2184 = vadd.f32 %v2182, %v2183
      %v2185 = vrot.slane %v2184, 1
      %v2186 = vadd.f32 %v2184, %v2185
      %v2187 = vsel %vm1783, %v2129, %v2165
      %v2188 = vsel %vm1783, %v2136, %v2172
      %v2189 = vsel %vm1783, %v2143, %v2179
      %v2190 = vsel %vm1783, %v2150, %v2186
      %v2195 = vrot.slane %v2188, 6
      %v2196 = vrot.slane %v2189, 4
      %v2197 = vrot.slane %v2190, 2
      %v2198 = vsel %vm1787, %v2187, %v2195
      %v2199 = vsel %vm1793, %v2196, %v2197
      %v2200 = vsel %vm1795, %v2198, %v2199
      %2202 = vst [vmem:[%s415] sm:$0xff] %v2200
      %s2203 = smul.u32 %s23, 4
      %s2204 = smul.u32 %s24, 2
      %s2205 = sadd.s32 %s2203, %s2204
      %s2206 = sadd.s32 %s2205, 1
      %s2207 = ssub.s32 %s2206, %s22
      %s2208 = smul.u32 2, %s2207
      %p2209 = scmp.lt.s32.totalorder %s2208, 15
      %s2210 = scalar_select %p2209, %s2208, 15
      %s2211 = smul.addr %s2210, 4
      %s2212 = smul.addr %s2211, 8
      %s2213 = scalar_lea.vmem %s4, %s2212
      %s2214 = smul.u32 %s23, 4
      %s2215 = smul.u32 %s24, 2
      %s2216 = sadd.s32 %s2214, %s2215
      %s2217 = sadd.s32 %s2216, 1
      %s2218 = ssub.s32 %s2217, %s22
      %p2219 = scmp.lt.s32.totalorder %s2218, 7
      %s2220 = scalar_select %p2219, %s2218, 7
      %s2221 = smul.addr %s2220, 4
      %s2222 = smul.addr %s2221, 2
      %s2223 = scalar_lea.vmem %s5, %s2222
      // Predicated region
      $region37: #{fcn32_forward.3} parent=35 // pred_check
        %p2224 = pneg %p181
      $region38: #{fcn32_forward.3} parent=35 // pred_check_branch
        %2226 = sbr.rel (%p2224) target = $region40
      $region39: #{fcn32_forward.3} parent=35 // pred_region
        %s2227 = smul.u32 %s23, 4
        %s2228 = smul.u32 %s24, 2
        %s2229 = sadd.s32 %s2227, %s2228
        %s2230 = sadd.s32 %s2229, 1
        %s2231 = ssub.s32 %s2230, %s22
        %s2232 = smul.u32 2, %s2231
      $region40: #{fcn32_forward.3} parent=35 // pred_fallthru
        _
      // Predicated region
      $region41: #{fcn32_forward.3} parent=35 // pred_check
        %p2233 = pneg %p217
      $region42: #{fcn32_forward.3} parent=35 // pred_check_branch
        %2235 = sbr.rel (%p2233) target = $region44
      $region43: #{fcn32_forward.3} parent=35 // pred_region
        %s2236 = smul.u32 %s23, 4
        %s2237 = smul.u32 %s24, 2
        %s2238 = sadd.s32 %s2236, %s2237
        %s2239 = sadd.s32 %s2238, 1
        %s2240 = ssub.s32 %s2239, %s22
      $region44: #{fcn32_forward.3} parent=35 // pred_fallthru
        _
    $region36: #{fcn32_forward.3} parent=5 // pred_fallthru
      _
    %p2241 = scmp.le.s32.totalorder 2, %s12
    // Predicated region
    $region45: #{fcn32_forward.3} parent=5 // pred_check
      %p2242 = pneg %p2241
    $region46: #{fcn32_forward.3} parent=5 // pred_check_branch
      %2244 = sbr.rel (%p2242) target = $region48
    $region47: #{fcn32_forward.3} parent=5 // pred_region
      %s2245 = ssub.s32 %s12, 2
      // Predicated region
      $region49: #{fcn32_forward.3} parent=47 // pred_check
        %p2246 = pneg %p187
      $region50: #{fcn32_forward.3} parent=47 // pred_check_branch
        %2248 = sbr.rel (%p2246) target = $region52
      $region51: #{fcn32_forward.3} parent=47 // pred_region
        %s2249 = smul.u32 %s26, 4
        %s2250 = smul.u32 %s27, 2
        %s2251 = sadd.s32 %s2249, %s2250
        %s2252 = sadd.s32 %s2251, 1
        %s2253 = ssub.s32 %s2252, %s25
        %s2254 = smul.u32 2, %s2253
        %p2255 = scmp.lt.s32.totalorder %s2254, 15
        %s2256 = scalar_select %p2255, %s2254, 15
        %s2257 = smul.addr %s2256, 4
        %s2258 = smul.addr %s2257, 8
        %s2259 = scalar_lea.vmem %s4, %s2258
      $region52: #{fcn32_forward.3} parent=47 // pred_fallthru
        _
      // Predicated region
      $region53: #{fcn32_forward.3} parent=47 // pred_check
        %p2260 = pneg %p223
      $region54: #{fcn32_forward.3} parent=47 // pred_check_branch
        %2262 = sbr.rel (%p2260) target = $region56
      $region55: #{fcn32_forward.3} parent=47 // pred_region
        %s2263 = smul.u32 %s26, 4
        %s2264 = smul.u32 %s27, 2
        %s2265 = sadd.s32 %s2263, %s2264
        %s2266 = sadd.s32 %s2265, 1
        %s2267 = ssub.s32 %s2266, %s25
        %p2268 = scmp.lt.s32.totalorder %s2267, 7
        %s2269 = scalar_select %p2268, %s2267, 7
        %s2270 = smul.addr %s2269, 4
        %s2271 = smul.addr %s2270, 2
        %s2272 = scalar_lea.vmem %s5, %s2271
      $region56: #{fcn32_forward.3} parent=47 // pred_fallthru
        _
    $region48: #{fcn32_forward.3} parent=5 // pred_fallthru
      _
  $region6: #{fcn32_forward.3} parent=0 // loop_footer
    %s16 = sadd.s32 1, %s12
  $region7: #{fcn32_forward.3} parent=0 // loop_footer_branch
    %11 = sbr.rel target = $region3
  $region8: #{fcn32_forward.3} parent=0 // loop_exit
    _

</llo_original>
